<compile_context>
chip_gen: v5e
topology: v5e:2x2
jax: 0.10.0
libtpu: 0.0.40
codegen_flags: <defaults>
</compile_context>

<pallas_src>
import jax
import jax.numpy as jnp
from jax.experimental import pallas as pl
from jax.experimental.pallas import tpu as pltpu

# ----------------------------- config --------------------------------------
# PyTorch defaults are data_dim=784, hidden_dim=1000; here we use smaller but
# lane-aligned sizes so the kernel is MXU/lane friendly while staying small.
DATA_DIM = 256           # must be even
HIDDEN_DIM = 256
BATCH = 256
TB = 128                 # batch rows per grid step (one MXU-sized tile)
N_COUPLING = 4           # len(self.m)
N_HIDDEN_LAYERS = 4      # hidden Linear+ReLU blocks per coupling MLP
D2 = DATA_DIM // 2


def nice_kernel(x_ref, s_ref, win_ref, bin_ref, whid_ref, bhid_ref,
                wout_ref, bout_ref, z_ref, a_sc, b_sc, t_sc):
    """One grid step = one hidden layer j of coupling layer i, batch tile b.

    x_ref : (TB, DATA_DIM)  half layout [even | odd]
    s_ref : (1, DATA_DIM)   half layout
    win_ref : (1, D2, H) bf16     bin_ref : (1, 1, H) f32
    whid_ref: (1, 1, H, H) bf16   bhid_ref: (1, 1, 1, H) f32
    wout_ref: (1, H, D2) bf16     bout_ref: (1, 1, D2) f32
    z_ref : (TB, DATA_DIM)  half layout output (written at the last (i, j))
    a_sc, b_sc : (TB, D2) f32 coupling state; t_sc : (TB, H) f32 activation
    """
    i = pl.program_id(1)
    j = pl.program_id(2)
    n_i = pl.num_programs(1)
    n_j = pl.num_programs(2)
    is_even = (i % 2) == 0

    # ---- init coupling state from the input tile at the first (i, j) -------
    @pl.when((i == 0) & (j == 0))
    def _():
        a_sc[...] = x_ref[:, :D2]    # x[:, ::2]  (even half)
        b_sc[...] = x_ref[:, D2:]    # x[:, 1::2] (odd half)

    # ---- input Linear + ReLU of MLP i (only at j == 0) ---------------------
    @pl.when(j == 0)
    def _():
        x_i1 = jnp.where(is_even, a_sc[...], b_sc[...])
        t = jnp.dot(x_i1.astype(jnp.bfloat16), win_ref[0],
                    preferred_element_type=jnp.float32)
        t_sc[...] = jnp.maximum(t + bin_ref[0], 0.0)

    # ---- hidden Linear(H, H) + ReLU number j (every step) ------------------
    t = jnp.dot(t_sc[...].astype(jnp.bfloat16), whid_ref[0, 0],
                preferred_element_type=jnp.float32)
    t_sc[...] = jnp.maximum(t + bhid_ref[0, 0], 0.0)

    # ---- output Linear(H, D2) + additive coupling update (at j == last) ----
    @pl.when(j == n_j - 1)
    def _():
        m = jnp.dot(t_sc[...].astype(jnp.bfloat16), wout_ref[0],
                    preferred_element_type=jnp.float32) + bout_ref[0]
        a = a_sc[...]
        b = b_sc[...]
        x_i1 = jnp.where(is_even, a, b)
        x_i2 = jnp.where(is_even, b, a)
        # x[:, ::2] = h_i1 = x_i1 ; x[:, 1::2] = h_i2 = x_i2 + m(x_i1)
        a_sc[...] = x_i1
        b_sc[...] = x_i2 + m

    # ---- finalize: z = exp(s) * x, lane-dense single output tile -----------
    @pl.when((i == n_i - 1) & (j == n_j - 1))
    def _():
        z_ref[:, :D2] = jnp.exp(s_ref[:, :D2]) * a_sc[...]
        z_ref[:, D2:] = jnp.exp(s_ref[:, D2:]) * b_sc[...]


@jax.jit
def nice_forward(x, params):
    """x: (B, DATA_DIM) f32. Returns (z, log_jacobian), matching NICE.forward."""
    win, bin_, whid, bhid, wout, bout, s = params
    B = x.shape[0]
    assert B % TB == 0 and DATA_DIM % 2 == 0

    # One gather pass each way: interleaved <-> [even half | odd half].
    perm = jnp.concatenate([jnp.arange(0, DATA_DIM, 2),
                            jnp.arange(1, DATA_DIM, 2)])
    inv_perm = jnp.argsort(perm)
    x_half = x[:, perm]
    s_half = s[perm].reshape(1, DATA_DIM)

    grid = (B // TB, N_COUPLING, N_HIDDEN_LAYERS)
    z_half = pl.pallas_call(
        nice_kernel,
        out_shape=jax.ShapeDtypeStruct((B, DATA_DIM), jnp.float32),
        grid_spec=pltpu.PrefetchScalarGridSpec(
            num_scalar_prefetch=0,
            grid=grid,
            in_specs=[
                pl.BlockSpec((TB, DATA_DIM), lambda b, i, j: (b, 0)),       # x
                pl.BlockSpec((1, DATA_DIM), lambda b, i, j: (0, 0)),        # s
                pl.BlockSpec((1, D2, HIDDEN_DIM), lambda b, i, j: (i, 0, 0)),     # win
                pl.BlockSpec((1, 1, HIDDEN_DIM), lambda b, i, j: (i, 0, 0)),      # bin
                pl.BlockSpec((1, 1, HIDDEN_DIM, HIDDEN_DIM),
                             lambda b, i, j: (i, j, 0, 0)),                       # whid
                pl.BlockSpec((1, 1, 1, HIDDEN_DIM), lambda b, i, j: (i, j, 0, 0)),  # bhid
                pl.BlockSpec((1, HIDDEN_DIM, D2), lambda b, i, j: (i, 0, 0)),     # wout
                pl.BlockSpec((1, 1, D2), lambda b, i, j: (i, 0, 0)),              # bout
            ],
            out_specs=pl.BlockSpec((TB, DATA_DIM), lambda b, i, j: (b, 0)),
            scratch_shapes=[
                pltpu.VMEM((TB, D2), jnp.float32),          # a (even half)
                pltpu.VMEM((TB, D2), jnp.float32),          # b (odd half)
                pltpu.VMEM((TB, HIDDEN_DIM), jnp.float32),  # MLP activation
            ],
        ),
        compiler_params=pltpu.CompilerParams(
            dimension_semantics=("parallel", "arbitrary", "arbitrary")),
    )(x_half, s_half, win, bin_, whid, bhid, wout, bout)

    z = z_half[:, inv_perm]
    # log-Jacobian is independent of x -> computed outside the kernel.
    log_jacobian = jnp.sum(s)
    return z, log_jacobian


def init_params(key):
    """Deterministic synthetic parameters (PyTorch-Linear-like uniform init).

    Weights stored in bf16 (MXU-native); biases and s in f32.
    """
    keys = jax.random.split(key, 7)

    def uni(k, shape, fan_in):
        bound = 1.0 / jnp.sqrt(jnp.float32(fan_in))
        return jax.random.uniform(k, shape, jnp.float32, -bound, bound)

    win = uni(keys[0], (N_COUPLING, D2, HIDDEN_DIM), D2).astype(jnp.bfloat16)
    bin_ = uni(keys[1], (N_COUPLING, 1, HIDDEN_DIM), D2)
    whid = uni(keys[2], (N_COUPLING, N_HIDDEN_LAYERS, HIDDEN_DIM, HIDDEN_DIM),
               HIDDEN_DIM).astype(jnp.bfloat16)
    bhid = uni(keys[3], (N_COUPLING, N_HIDDEN_LAYERS, 1, HIDDEN_DIM), HIDDEN_DIM)
    wout = uni(keys[4], (N_COUPLING, HIDDEN_DIM, D2),
               HIDDEN_DIM).astype(jnp.bfloat16)
    bout = uni(keys[5], (N_COUPLING, 1, D2), HIDDEN_DIM)
    s = jax.random.normal(keys[6], (DATA_DIM,), jnp.float32)  # self.s ~ randn
    return win, bin_, whid, bhid, wout, bout, s


def nice_forward_ref(x, params):
    """Pure-JAX reference mirroring the kernel's mixed precision
    (bf16 matmul inputs, f32 accumulation / elementwise / state)."""
    win, bin_, whid, bhid, wout, bout, s = params
    a = x[:, 0::2]
    b = x[:, 1::2]
    for i in range(N_COUPLING):
        x_i1 = a if i % 2 == 0 else b
        x_i2 = b if i % 2 == 0 else a
        t = jnp.dot(x_i1.astype(jnp.bfloat16), win[i],
                    preferred_element_type=jnp.float32)
        t = jnp.maximum(t + bin_[i], 0.0)
        for j in range(N_HIDDEN_LAYERS):
            t = jnp.dot(t.astype(jnp.bfloat16), whid[i, j],
                        preferred_element_type=jnp.float32)
            t = jnp.maximum(t + bhid[i, j], 0.0)
        m = jnp.dot(t.astype(jnp.bfloat16), wout[i],
                    preferred_element_type=jnp.float32) + bout[i]
        a, b = x_i1, x_i2 + m
    z = jnp.zeros_like(x)
    z = z.at[:, 0::2].set(a).at[:, 1::2].set(b)
    return jnp.exp(s) * z, jnp.sum(s)


if __name__ == "__main__":
    key = jax.random.PRNGKey(0)
    k_x, k_p = jax.random.split(key)
    x = jax.random.normal(k_x, (BATCH, DATA_DIM), jnp.float32)
    params = init_params(k_p)

    z, log_jac = nice_forward(x, params)
    z = jax.block_until_ready(z)
    log_jac = jax.block_until_ready(log_jac)

    z_ref, lj_ref = nice_forward_ref(x, params)
    assert jnp.allclose(z, z_ref, atol=2e-2, rtol=2e-2), "z mismatch"
    assert jnp.allclose(log_jac, lj_ref, atol=1e-5, rtol=1e-5), "logjac mismatch"

    # TODO(synk): NICE.invert (inverse pass) and the logistic-prior /
    # training utilities are not implemented; only forward(x) is kernelized.
    print("KERNEL_OK")
</pallas_src>

<mosaic_0001>
module attributes {stable_mosaic.version = 11 : i64} {
  func.func @nice_kernel(%arg0: i32, %arg1: i32, %arg2: i32, %arg3: memref<128x256xf32, #tpu.memory_space<vmem>>, %arg4: memref<1x256xf32, #tpu.memory_space<vmem>>, %arg5: memref<1x128x256xbf16, #tpu.memory_space<vmem>>, %arg6: memref<1x1x256xf32, #tpu.memory_space<vmem>>, %arg7: memref<1x1x256x256xbf16, #tpu.memory_space<vmem>>, %arg8: memref<1x1x1x256xf32, #tpu.memory_space<vmem>>, %arg9: memref<1x256x128xbf16, #tpu.memory_space<vmem>>, %arg10: memref<1x1x128xf32, #tpu.memory_space<vmem>>, %arg11: memref<128x256xf32, #tpu.memory_space<vmem>>, %arg12: memref<128x128xf32, #tpu.memory_space<vmem>>, %arg13: memref<128x128xf32, #tpu.memory_space<vmem>>, %arg14: memref<128x256xf32, #tpu.memory_space<vmem>>) attributes {dimension_semantics = [#tpu.dimension_semantics<parallel>, #tpu.dimension_semantics<arbitrary>, #tpu.dimension_semantics<arbitrary>], iteration_bounds = array<i64: 2, 4, 4>, scalar_prefetch = 0 : i64, scratch_operands = 3 : i64, tpu.core_type = #tpu.core_type<tc>, window_params = [{transform_indices = @transform_0, window_bounds = array<i64: 128, 256>}, {pipeline_mode = #tpu.pipeline_mode<synchronous>, transform_indices = @transform_1, window_bounds = array<i64: 1, 256>}, {transform_indices = @transform_2, window_bounds = array<i64: 1, 128, 256>}, {transform_indices = @transform_3, window_bounds = array<i64: 1, 1, 256>}, {transform_indices = @transform_4, window_bounds = array<i64: 1, 1, 256, 256>}, {transform_indices = @transform_5, window_bounds = array<i64: 1, 1, 1, 256>}, {transform_indices = @transform_6, window_bounds = array<i64: 1, 256, 128>}, {transform_indices = @transform_7, window_bounds = array<i64: 1, 1, 128>}, {transform_indices = @transform_8, window_bounds = array<i64: 128, 256>}]} {
    %c2_i32 = arith.constant 2 : i32
    %c0_i32 = arith.constant 0 : i32
    %0 = arith.cmpi eq, %c2_i32, %c0_i32 : i32
    %c1_i32 = arith.constant 1 : i32
    %1 = arith.select %0, %c1_i32, %c2_i32 : i32
    %2 = arith.remsi %arg1, %1 : i32
    %c0_i32_0 = arith.constant 0 : i32
    %3 = arith.cmpi ne, %2, %c0_i32_0 : i32
    %c0_i32_1 = arith.constant 0 : i32
    %4 = arith.cmpi slt, %2, %c0_i32_1 : i32
    %c0_i32_2 = arith.constant 0 : i32
    %5 = arith.cmpi slt, %1, %c0_i32_2 : i32
    %6 = arith.xori %4, %5 : i1
    %7 = arith.andi %6, %3 : i1
    %8 = arith.addi %2, %1 : i32
    %9 = arith.select %7, %8, %2 : i32
    %c0_i32_3 = arith.constant 0 : i32
    %10 = arith.cmpi eq, %9, %c0_i32_3 : i32
    %c0_i32_4 = arith.constant 0 : i32
    %11 = arith.cmpi eq, %arg1, %c0_i32_4 : i32
    %c0_i32_5 = arith.constant 0 : i32
    %12 = arith.cmpi eq, %arg2, %c0_i32_5 : i32
    %13 = arith.andi %11, %12 : i1
    %14 = arith.extui %13 : i1 to i32
    %c0_i32_6 = arith.constant 0 : i32
    %15 = arith.cmpi ne, %14, %c0_i32_6 : i32
    scf.if %15 {
      %c0_25 = arith.constant 0 : index
      %c0_26 = arith.constant 0 : index
      %39 = vector.load %arg3[%c0_25, %c0_26] : memref<128x256xf32, #tpu.memory_space<vmem>>, vector<128x128xf32>
      %c0_27 = arith.constant 0 : index
      %c0_28 = arith.constant 0 : index
      %40 = vector.load %arg12[%c0_27, %c0_28] : memref<128x128xf32, #tpu.memory_space<vmem>>, vector<128x128xf32>
      tpu.vector_store %arg12[%c0_27, %c0_28], %39 {strides = array<i32>} : memref<128x128xf32, #tpu.memory_space<vmem>>, vector<128x128xf32>,
      %c0_29 = arith.constant 0 : index
      %c128 = arith.constant 128 : index
      %41 = vector.load %arg3[%c0_29, %c128] : memref<128x256xf32, #tpu.memory_space<vmem>>, vector<128x128xf32>
      %c0_30 = arith.constant 0 : index
      %c0_31 = arith.constant 0 : index
      %42 = vector.load %arg13[%c0_30, %c0_31] : memref<128x128xf32, #tpu.memory_space<vmem>>, vector<128x128xf32>
      tpu.vector_store %arg13[%c0_30, %c0_31], %41 {strides = array<i32>} : memref<128x128xf32, #tpu.memory_space<vmem>>, vector<128x128xf32>,
    } else {
    }
    %c0_i32_7 = arith.constant 0 : i32
    %16 = arith.cmpi eq, %arg2, %c0_i32_7 : i32
    %17 = arith.extui %16 : i1 to i32
    %c0_i32_8 = arith.constant 0 : i32
    %18 = arith.cmpi ne, %17, %c0_i32_8 : i32
    scf.if %18 {
      %c0_25 = arith.constant 0 : index
      %c0_26 = arith.constant 0 : index
      %39 = vector.load %arg12[%c0_25, %c0_26] : memref<128x128xf32, #tpu.memory_space<vmem>>, vector<128x128xf32>
      %c0_27 = arith.constant 0 : index
      %c0_28 = arith.constant 0 : index
      %40 = vector.load %arg13[%c0_27, %c0_28] : memref<128x128xf32, #tpu.memory_space<vmem>>, vector<128x128xf32>
      %41 = arith.select %10, %39, %40 : vector<128x128xf32>
      %42 = arith.truncf %41 : vector<128x128xf32> to vector<128x128xbf16>
      %c0_29 = arith.constant 0 : index
      %c0_30 = arith.constant 0 : index
      %c0_31 = arith.constant 0 : index
      %43 = vector.load %arg5[%c0_29, %c0_30, %c0_31] : memref<1x128x256xbf16, #tpu.memory_space<vmem>>, vector<1x128x256xbf16>
      %44 = vector.shape_cast %43 : vector<1x128x256xbf16> to vector<128x256xbf16>
      %cst_32 = arith.constant dense<0.000000e+00> : vector<128x256xf32>
      %45 = tpu.matmul %42, %44, %cst_32 {dimension_numbers = #tpu.dot_dimension_numbers<[1], [0], [0], [1], [0, 0, 1, 1], [], []>} : vector<128x128xbf16>, vector<128x256xbf16>, vector<128x256xf32> -> vector<128x256xf32>
      %c0_33 = arith.constant 0 : index
      %c0_34 = arith.constant 0 : index
      %c0_35 = arith.constant 0 : index
      %46 = vector.load %arg6[%c0_33, %c0_34, %c0_35] : memref<1x1x256xf32, #tpu.memory_space<vmem>>, vector<1x1x256xf32>
      %47 = vector.shape_cast %46 : vector<1x1x256xf32> to vector<1x256xf32>
      %48 = vector.broadcast %47 : vector<1x256xf32> to vector<128x256xf32>
      %49 = arith.addf %45, %48 : vector<128x256xf32>
      %cst_36 = arith.constant 0.000000e+00 : f32
      %50 = vector.broadcast %cst_36 : f32 to vector<128x256xf32>
      %51 = arith.maximumf %49, %50 : vector<128x256xf32>
      %c0_37 = arith.constant 0 : index
      %c0_38 = arith.constant 0 : index
      %52 = vector.load %arg14[%c0_37, %c0_38] : memref<128x256xf32, #tpu.memory_space<vmem>>, vector<128x256xf32>
      tpu.vector_store %arg14[%c0_37, %c0_38], %51 {strides = array<i32>} : memref<128x256xf32, #tpu.memory_space<vmem>>, vector<128x256xf32>,
    } else {
    }
    %c0 = arith.constant 0 : index
    %c0_9 = arith.constant 0 : index
    %19 = vector.load %arg14[%c0, %c0_9] : memref<128x256xf32, #tpu.memory_space<vmem>>, vector<128x256xf32>
    %20 = arith.truncf %19 : vector<128x256xf32> to vector<128x256xbf16>
    %c0_10 = arith.constant 0 : index
    %c0_11 = arith.constant 0 : index
    %c0_12 = arith.constant 0 : index
    %c0_13 = arith.constant 0 : index
    %21 = vector.load %arg7[%c0_10, %c0_11, %c0_12, %c0_13] : memref<1x1x256x256xbf16, #tpu.memory_space<vmem>>, vector<1x1x256x256xbf16>
    %22 = vector.shape_cast %21 : vector<1x1x256x256xbf16> to vector<256x256xbf16>
    %cst = arith.constant dense<0.000000e+00> : vector<128x256xf32>
    %23 = tpu.matmul %20, %22, %cst {dimension_numbers = #tpu.dot_dimension_numbers<[1], [0], [0], [1], [0, 0, 1, 1], [], []>} : vector<128x256xbf16>, vector<256x256xbf16>, vector<128x256xf32> -> vector<128x256xf32>
    %c0_14 = arith.constant 0 : index
    %c0_15 = arith.constant 0 : index
    %c0_16 = arith.constant 0 : index
    %c0_17 = arith.constant 0 : index
    %24 = vector.load %arg8[%c0_14, %c0_15, %c0_16, %c0_17] : memref<1x1x1x256xf32, #tpu.memory_space<vmem>>, vector<1x1x1x256xf32>
    %25 = vector.shape_cast %24 : vector<1x1x1x256xf32> to vector<1x256xf32>
    %26 = vector.broadcast %25 : vector<1x256xf32> to vector<128x256xf32>
    %27 = arith.addf %23, %26 : vector<128x256xf32>
    %cst_18 = arith.constant 0.000000e+00 : f32
    %28 = vector.broadcast %cst_18 : f32 to vector<128x256xf32>
    %29 = arith.maximumf %27, %28 : vector<128x256xf32>
    %c0_19 = arith.constant 0 : index
    %c0_20 = arith.constant 0 : index
    %30 = vector.load %arg14[%c0_19, %c0_20] : memref<128x256xf32, #tpu.memory_space<vmem>>, vector<128x256xf32>
    tpu.vector_store %arg14[%c0_19, %c0_20], %29 {strides = array<i32>} : memref<128x256xf32, #tpu.memory_space<vmem>>, vector<128x256xf32>,
    %c3_i32 = arith.constant 3 : i32
    %31 = arith.cmpi eq, %arg2, %c3_i32 : i32
    %32 = arith.extui %31 : i1 to i32
    %c0_i32_21 = arith.constant 0 : i32
    %33 = arith.cmpi ne, %32, %c0_i32_21 : i32
    scf.if %33 {
      %c0_25 = arith.constant 0 : index
      %c0_26 = arith.constant 0 : index
      %39 = vector.load %arg14[%c0_25, %c0_26] : memref<128x256xf32, #tpu.memory_space<vmem>>, vector<128x256xf32>
      %40 = arith.truncf %39 : vector<128x256xf32> to vector<128x256xbf16>
      %c0_27 = arith.constant 0 : index
      %c0_28 = arith.constant 0 : index
      %c0_29 = arith.constant 0 : index
      %41 = vector.load %arg9[%c0_27, %c0_28, %c0_29] : memref<1x256x128xbf16, #tpu.memory_space<vmem>>, vector<1x256x128xbf16>
      %42 = vector.shape_cast %41 : vector<1x256x128xbf16> to vector<256x128xbf16>
      %cst_30 = arith.constant dense<0.000000e+00> : vector<128x128xf32>
      %43 = tpu.matmul %40, %42, %cst_30 {dimension_numbers = #tpu.dot_dimension_numbers<[1], [0], [0], [1], [0, 0, 1, 1], [], []>} : vector<128x256xbf16>, vector<256x128xbf16>, vector<128x128xf32> -> vector<128x128xf32>
      %c0_31 = arith.constant 0 : index
      %c0_32 = arith.constant 0 : index
      %c0_33 = arith.constant 0 : index
      %44 = vector.load %arg10[%c0_31, %c0_32, %c0_33] : memref<1x1x128xf32, #tpu.memory_space<vmem>>, vector<1x1x128xf32>
      %45 = vector.shape_cast %44 : vector<1x1x128xf32> to vector<1x128xf32>
      %46 = vector.broadcast %45 : vector<1x128xf32> to vector<128x128xf32>
      %47 = arith.addf %43, %46 : vector<128x128xf32>
      %c0_34 = arith.constant 0 : index
      %c0_35 = arith.constant 0 : index
      %48 = vector.load %arg12[%c0_34, %c0_35] : memref<128x128xf32, #tpu.memory_space<vmem>>, vector<128x128xf32>
      %c0_36 = arith.constant 0 : index
      %c0_37 = arith.constant 0 : index
      %49 = vector.load %arg13[%c0_36, %c0_37] : memref<128x128xf32, #tpu.memory_space<vmem>>, vector<128x128xf32>
      %50 = arith.select %10, %48, %49 : vector<128x128xf32>
      %51 = arith.select %10, %49, %48 : vector<128x128xf32>
      %c0_38 = arith.constant 0 : index
      %c0_39 = arith.constant 0 : index
      %52 = vector.load %arg12[%c0_38, %c0_39] : memref<128x128xf32, #tpu.memory_space<vmem>>, vector<128x128xf32>
      tpu.vector_store %arg12[%c0_38, %c0_39], %50 {strides = array<i32>} : memref<128x128xf32, #tpu.memory_space<vmem>>, vector<128x128xf32>,
      %53 = arith.addf %51, %47 : vector<128x128xf32>
      %c0_40 = arith.constant 0 : index
      %c0_41 = arith.constant 0 : index
      %54 = vector.load %arg13[%c0_40, %c0_41] : memref<128x128xf32, #tpu.memory_space<vmem>>, vector<128x128xf32>
      tpu.vector_store %arg13[%c0_40, %c0_41], %53 {strides = array<i32>} : memref<128x128xf32, #tpu.memory_space<vmem>>, vector<128x128xf32>,
    } else {
    }
    %c3_i32_22 = arith.constant 3 : i32
    %34 = arith.cmpi eq, %arg1, %c3_i32_22 : i32
    %c3_i32_23 = arith.constant 3 : i32
    %35 = arith.cmpi eq, %arg2, %c3_i32_23 : i32
    %36 = arith.andi %34, %35 : i1
    %37 = arith.extui %36 : i1 to i32
    %c0_i32_24 = arith.constant 0 : i32
    %38 = arith.cmpi ne, %37, %c0_i32_24 : i32
    scf.if %38 {
      %c0_25 = arith.constant 0 : index
      %c0_26 = arith.constant 0 : index
      %39 = vector.load %arg4[%c0_25, %c0_26] : memref<1x256xf32, #tpu.memory_space<vmem>>, vector<1x128xf32>
      %40 = math.exp %39 : vector<1x128xf32>
      %c0_27 = arith.constant 0 : index
      %c0_28 = arith.constant 0 : index
      %41 = vector.load %arg12[%c0_27, %c0_28] : memref<128x128xf32, #tpu.memory_space<vmem>>, vector<128x128xf32>
      %42 = vector.broadcast %40 : vector<1x128xf32> to vector<128x128xf32>
      %43 = arith.mulf %42, %41 : vector<128x128xf32>
      %c0_29 = arith.constant 0 : index
      %c0_30 = arith.constant 0 : index
      %44 = vector.load %arg11[%c0_29, %c0_30] : memref<128x256xf32, #tpu.memory_space<vmem>>, vector<128x128xf32>
      tpu.vector_store %arg11[%c0_29, %c0_30], %43 {strides = array<i32>} : memref<128x256xf32, #tpu.memory_space<vmem>>, vector<128x128xf32>,
      %c0_31 = arith.constant 0 : index
      %c128 = arith.constant 128 : index
      %45 = vector.load %arg4[%c0_31, %c128] : memref<1x256xf32, #tpu.memory_space<vmem>>, vector<1x128xf32>
      %46 = math.exp %45 : vector<1x128xf32>
      %c0_32 = arith.constant 0 : index
      %c0_33 = arith.constant 0 : index
      %47 = vector.load %arg13[%c0_32, %c0_33] : memref<128x128xf32, #tpu.memory_space<vmem>>, vector<128x128xf32>
      %48 = vector.broadcast %46 : vector<1x128xf32> to vector<128x128xf32>
      %49 = arith.mulf %48, %47 : vector<128x128xf32>
      %c0_34 = arith.constant 0 : index
      %c128_35 = arith.constant 128 : index
      %50 = vector.load %arg11[%c0_34, %c128_35] : memref<128x256xf32, #tpu.memory_space<vmem>>, vector<128x128xf32>
      tpu.vector_store %arg11[%c0_34, %c128_35], %49 {strides = array<i32>} : memref<128x256xf32, #tpu.memory_space<vmem>>, vector<128x128xf32>,
    } else {
    }
    return
  }
  func.func @transform_0(%arg0: i32, %arg1: i32, %arg2: i32) -> (i32, i32) {
    %c0_i32 = arith.constant 0 : i32
    %c0_i32_0 = arith.constant 0 : i32
    return %arg0, %c0_i32 : i32, i32
  }
  func.func @transform_1(%arg0: i32, %arg1: i32, %arg2: i32) -> (i32, i32) {
    %c0_i32 = arith.constant 0 : i32
    %c0_i32_0 = arith.constant 0 : i32
    %c0_i32_1 = arith.constant 0 : i32
    return %c0_i32, %c0_i32_0 : i32, i32
  }
  func.func @transform_2(%arg0: i32, %arg1: i32, %arg2: i32) -> (i32, i32, i32) {
    %c0_i32 = arith.constant 0 : i32
    %c0_i32_0 = arith.constant 0 : i32
    %c0_i32_1 = arith.constant 0 : i32
    return %arg1, %c0_i32, %c0_i32_0 : i32, i32, i32
  }
  func.func @transform_3(%arg0: i32, %arg1: i32, %arg2: i32) -> (i32, i32, i32) {
    %c0_i32 = arith.constant 0 : i32
    %c0_i32_0 = arith.constant 0 : i32
    %c0_i32_1 = arith.constant 0 : i32
    return %arg1, %c0_i32, %c0_i32_0 : i32, i32, i32
  }
  func.func @transform_4(%arg0: i32, %arg1: i32, %arg2: i32) -> (i32, i32, i32, i32) {
    %c0_i32 = arith.constant 0 : i32
    %c0_i32_0 = arith.constant 0 : i32
    %c0_i32_1 = arith.constant 0 : i32
    return %arg1, %arg2, %c0_i32, %c0_i32_0 : i32, i32, i32, i32
  }
  func.func @transform_5(%arg0: i32, %arg1: i32, %arg2: i32) -> (i32, i32, i32, i32) {
    %c0_i32 = arith.constant 0 : i32
    %c0_i32_0 = arith.constant 0 : i32
    %c0_i32_1 = arith.constant 0 : i32
    return %arg1, %arg2, %c0_i32, %c0_i32_0 : i32, i32, i32, i32
  }
  func.func @transform_6(%arg0: i32, %arg1: i32, %arg2: i32) -> (i32, i32, i32) {
    %c0_i32 = arith.constant 0 : i32
    %c0_i32_0 = arith.constant 0 : i32
    %c0_i32_1 = arith.constant 0 : i32
    return %arg1, %c0_i32, %c0_i32_0 : i32, i32, i32
  }
  func.func @transform_7(%arg0: i32, %arg1: i32, %arg2: i32) -> (i32, i32, i32) {
    %c0_i32 = arith.constant 0 : i32
    %c0_i32_0 = arith.constant 0 : i32
    %c0_i32_1 = arith.constant 0 : i32
    return %arg1, %c0_i32, %c0_i32_0 : i32, i32, i32
  }
  func.func @transform_8(%arg0: i32, %arg1: i32, %arg2: i32) -> (i32, i32) {
    %c0_i32 = arith.constant 0 : i32
    %c0_i32_0 = arith.constant 0 : i32
    return %arg0, %c0_i32 : i32, i32
  }
}

</mosaic_0001>

<llo_original>
// kernel: nice_forward.1
$region0: #{nice_forward.1}
  #allocation0 [shape = 'u32[]', space=smem, size = 0x4, offset = 0x4, fixed_abs, tag = 'smem constant byte address 0x4 - core index']
  #allocation1 [shape = 'u32[72,128]{1,0:T(1,128)}', space=vmem, size = 0x9000, scoped, tag = 'internal scratch']
  #allocation2 [shape = 'f32[128,128]{1,0:T(8,128)}', space=vmem, size = 0x10000, scoped, tag = 'scratch operand']
  #allocation3 [shape = 'f32[128,128]{1,0:T(8,128)}', space=vmem, size = 0x10000, scoped, tag = 'scratch operand']
  #allocation4 [shape = 'f32[128,256]{1,0:T(8,128)}', space=vmem, size = 0x20000, scoped, tag = 'scratch operand']
  %s0 = inlined_call_operand.vmem [shape: f32[256,256], index: 0, kind: input, shape index: {}]
  %s1 = inlined_call_operand.vmem [shape: f32[1,256], index: 1, kind: input, shape index: {}]
  %s2 = inlined_call_operand.vmem [shape: bf16[4,128,256], index: 2, kind: input, shape index: {}]
  %s3 = inlined_call_operand.vmem [shape: f32[4,1,256], index: 3, kind: input, shape index: {}]
  %s4 = inlined_call_operand.vmem [shape: bf16[4,4,256,256], index: 4, kind: input, shape index: {}]
  %s5 = inlined_call_operand.vmem [shape: f32[4,4,1,256], index: 5, kind: input, shape index: {}]
  %s6 = inlined_call_operand.vmem [shape: bf16[4,256,128], index: 6, kind: input, shape index: {}]
  %s7 = inlined_call_operand.vmem [shape: f32[4,1,128], index: 7, kind: input, shape index: {}]
  %s8 = inlined_call_operand.vmem [shape: f32[256,256], index: 8, kind: output, shape index: {}]
  %s9 = sld [smem:[#allocation0]]
  $region81: #{nice_forward.1} parent=0
    _
  %s11 = ssub.s32 1, %s9
  %s12 = scalar_select 0, %s11, %s9
  loop: start=0, step=1, limit=34
  $region2: #{nice_forward.1} parent=0 // loop_pre_header
    _
  $region3: #{nice_forward.1} parent=0 // loop_header
    %s14 = sphi 0, %s18
    %p15 = scmp.ge.s32.totalorder %s14, 34
    %s21 = sphi 0, %s40
    %s22 = sphi 0, %s36
    %s23 = sphi 0, %s32
    %s24 = sphi 0, %s21
    %s25 = sphi 0, %s22
    %s26 = sphi 0, %s23
    %s27 = sphi 0, %s24
    %s28 = sphi 0, %s25
    %s29 = sphi 0, %s26
    %s43 = sphi 0, %s45
    %s46 = sphi 0, %s43
    %s47 = sphi 0, %s46
    %s63 = sphi 0, %s47
    %s67 = sphi 0, %s67
    %s69 = sphi 0, %s67
    %s70 = sphi 0, %s69
    %s84 = sphi 0, %s70
    %s90 = sphi 0, %s92
    %s93 = sphi 0, %s90
    %s94 = sphi 0, %s93
    %s110 = sphi 0, %s94
    %s116 = sphi 0, %s118
    %s119 = sphi 0, %s116
    %s120 = sphi 0, %s119
    %s136 = sphi 0, %s120
    %s144 = sphi 0, %s146
    %s147 = sphi 0, %s144
    %s148 = sphi 0, %s147
    %s164 = sphi 0, %s148
    %s172 = sphi 0, %s174
    %s175 = sphi 0, %s172
    %s176 = sphi 0, %s175
    %s192 = sphi 0, %s176
    %s198 = sphi 0, %s200
    %s201 = sphi 0, %s198
    %s202 = sphi 0, %s201
    %s218 = sphi 0, %s202
    %s224 = sphi 0, %s226
    %s227 = sphi 0, %s224
    %s228 = sphi 0, %s227
    %s244 = sphi 0, %s228
    %s250 = sphi 0, %s252
    %s253 = sphi 0, %s250
    %s254 = sphi 0, %s253
    %s270 = sphi 0, %s254
  $region4: #{nice_forward.1} parent=0 // loop_header_branch
    %17 = sbr.rel (%p15) target = $region8
  $region5: #{nice_forward.1} parent=0 // loop_body
    %s19 = ssub.s32 %s14, 1
    %s20 = ssub.s32 %s14, 2
    %s30 = sadd.s32 1, %s23
    %p31 = scmp.ge.s32.totalorder %s30, 4
    %s32 = scalar_select %p31, 0, %s30
    %s33 = sadd.s32 1, %s22
    %s34 = scalar_select %p31, %s33, %s22
    %p35 = scmp.ge.s32.totalorder %s34, 4
    %s36 = scalar_select %p35, 0, %s34
    %s37 = sadd.s32 1, %s21
    %s38 = scalar_select %p35, %s37, %s21
    %p39 = scmp.ge.s32.totalorder %s38, 2
    %s40 = scalar_select %p39, 0, %s38
    %s41 = ssub.s32 %s21, %s40
    %p42 = scmp.eq.s32.totalorder %s41, 0
    %s44 = sadd.s32 %s43, 1
    %s45 = scalar_select %p42, %s43, %s44
    %p48 = pneg %p42
    %p49 = scmp.eq.s32.totalorder %s14, 31
    %p50 = por %p48, %p49
    %p51 = scmp.ne.s32.totalorder %s43, %s46
    %p52 = scmp.eq.s32.totalorder %s14, 0
    %p53 = por %p51, %p52
    %p54 = scmp.ne.s32.totalorder %s43, %s46
    %p55 = scmp.eq.s32.totalorder %s19, 31
    %p56 = por %p54, %p55
    %p57 = scmp.ne.s32.totalorder %s46, %s47
    %p58 = scmp.eq.s32.totalorder %s19, 0
    %p59 = por %p57, %p58
    %p60 = scmp.ne.s32.totalorder %s46, %s47
    %p61 = scmp.eq.s32.totalorder %s20, 31
    %p62 = por %p60, %p61
    %p64 = scmp.ne.s32.totalorder %s47, %s63
    %p65 = scmp.eq.s32.totalorder %s20, 0
    %p66 = por %p64, %p65
    %s68 = sadd.s32 %s67, 1
    %p71 = scmp.eq.s32.totalorder %s14, 31
    %p72 = scmp.ne.s32.totalorder %s67, %s69
    %p73 = scmp.eq.s32.totalorder %s14, 0
    %p74 = por %p72, %p73
    %p75 = scmp.ne.s32.totalorder %s67, %s69
    %p76 = scmp.eq.s32.totalorder %s19, 31
    %p77 = por %p75, %p76
    %p78 = scmp.ne.s32.totalorder %s69, %s70
    %p79 = scmp.eq.s32.totalorder %s19, 0
    %p80 = por %p78, %p79
    %p81 = scmp.ne.s32.totalorder %s69, %s70
    %p82 = scmp.eq.s32.totalorder %s20, 31
    %p83 = por %p81, %p82
    %p85 = scmp.ne.s32.totalorder %s70, %s84
    %p86 = scmp.eq.s32.totalorder %s20, 0
    %p87 = por %p85, %p86
    %s88 = ssub.s32 %s22, %s36
    %p89 = scmp.eq.s32.totalorder %s88, 0
    %s91 = sadd.s32 %s90, 1
    %s92 = scalar_select %p89, %s90, %s91
    %p95 = pneg %p89
    %p96 = scmp.eq.s32.totalorder %s14, 31
    %p97 = por %p95, %p96
    %p98 = scmp.ne.s32.totalorder %s90, %s93
    %p99 = scmp.eq.s32.totalorder %s14, 0
    %p100 = por %p98, %p99
    %p101 = scmp.ne.s32.totalorder %s90, %s93
    %p102 = scmp.eq.s32.totalorder %s19, 31
    %p103 = por %p101, %p102
    %p104 = scmp.ne.s32.totalorder %s93, %s94
    %p105 = scmp.eq.s32.totalorder %s19, 0
    %p106 = por %p104, %p105
    %p107 = scmp.ne.s32.totalorder %s93, %s94
    %p108 = scmp.eq.s32.totalorder %s20, 31
    %p109 = por %p107, %p108
    %p111 = scmp.ne.s32.totalorder %s94, %s110
    %p112 = scmp.eq.s32.totalorder %s20, 0
    %p113 = por %p111, %p112
    %s114 = ssub.s32 %s22, %s36
    %p115 = scmp.eq.s32.totalorder %s114, 0
    %s117 = sadd.s32 %s116, 1
    %s118 = scalar_select %p115, %s116, %s117
    %p121 = pneg %p115
    %p122 = scmp.eq.s32.totalorder %s14, 31
    %p123 = por %p121, %p122
    %p124 = scmp.ne.s32.totalorder %s116, %s119
    %p125 = scmp.eq.s32.totalorder %s14, 0
    %p126 = por %p124, %p125
    %p127 = scmp.ne.s32.totalorder %s116, %s119
    %p128 = scmp.eq.s32.totalorder %s19, 31
    %p129 = por %p127, %p128
    %p130 = scmp.ne.s32.totalorder %s119, %s120
    %p131 = scmp.eq.s32.totalorder %s19, 0
    %p132 = por %p130, %p131
    %p133 = scmp.ne.s32.totalorder %s119, %s120
    %p134 = scmp.eq.s32.totalorder %s20, 31
    %p135 = por %p133, %p134
    %p137 = scmp.ne.s32.totalorder %s120, %s136
    %p138 = scmp.eq.s32.totalorder %s20, 0
    %p139 = por %p137, %p138
    %s140 = ssub.s32 %s22, %s36
    %s141 = ssub.s32 %s23, %s32
    %s142 = sor.u32 %s140, %s141
    %p143 = scmp.eq.s32.totalorder %s142, 0
    %s145 = sadd.s32 %s144, 1
    %s146 = scalar_select %p143, %s144, %s145
    %p149 = pneg %p143
    %p150 = scmp.eq.s32.totalorder %s14, 31
    %p151 = por %p149, %p150
    %p152 = scmp.ne.s32.totalorder %s144, %s147
    %p153 = scmp.eq.s32.totalorder %s14, 0
    %p154 = por %p152, %p153
    %p155 = scmp.ne.s32.totalorder %s144, %s147
    %p156 = scmp.eq.s32.totalorder %s19, 31
    %p157 = por %p155, %p156
    %p158 = scmp.ne.s32.totalorder %s147, %s148
    %p159 = scmp.eq.s32.totalorder %s19, 0
    %p160 = por %p158, %p159
    %p161 = scmp.ne.s32.totalorder %s147, %s148
    %p162 = scmp.eq.s32.totalorder %s20, 31
    %p163 = por %p161, %p162
    %p165 = scmp.ne.s32.totalorder %s148, %s164
    %p166 = scmp.eq.s32.totalorder %s20, 0
    %p167 = por %p165, %p166
    %s168 = ssub.s32 %s22, %s36
    %s169 = ssub.s32 %s23, %s32
    %s170 = sor.u32 %s168, %s169
    %p171 = scmp.eq.s32.totalorder %s170, 0
    %s173 = sadd.s32 %s172, 1
    %s174 = scalar_select %p171, %s172, %s173
    %p177 = pneg %p171
    %p178 = scmp.eq.s32.totalorder %s14, 31
    %p179 = por %p177, %p178
    %p180 = scmp.ne.s32.totalorder %s172, %s175
    %p181 = scmp.eq.s32.totalorder %s14, 0
    %p182 = por %p180, %p181
    %p183 = scmp.ne.s32.totalorder %s172, %s175
    %p184 = scmp.eq.s32.totalorder %s19, 31
    %p185 = por %p183, %p184
    %p186 = scmp.ne.s32.totalorder %s175, %s176
    %p187 = scmp.eq.s32.totalorder %s19, 0
    %p188 = por %p186, %p187
    %p189 = scmp.ne.s32.totalorder %s175, %s176
    %p190 = scmp.eq.s32.totalorder %s20, 31
    %p191 = por %p189, %p190
    %p193 = scmp.ne.s32.totalorder %s176, %s192
    %p194 = scmp.eq.s32.totalorder %s20, 0
    %p195 = por %p193, %p194
    %s196 = ssub.s32 %s22, %s36
    %p197 = scmp.eq.s32.totalorder %s196, 0
    %s199 = sadd.s32 %s198, 1
    %s200 = scalar_select %p197, %s198, %s199
    %p203 = pneg %p197
    %p204 = scmp.eq.s32.totalorder %s14, 31
    %p205 = por %p203, %p204
    %p206 = scmp.ne.s32.totalorder %s198, %s201
    %p207 = scmp.eq.s32.totalorder %s14, 0
    %p208 = por %p206, %p207
    %p209 = scmp.ne.s32.totalorder %s198, %s201
    %p210 = scmp.eq.s32.totalorder %s19, 31
    %p211 = por %p209, %p210
    %p212 = scmp.ne.s32.totalorder %s201, %s202
    %p213 = scmp.eq.s32.totalorder %s19, 0
    %p214 = por %p212, %p213
    %p215 = scmp.ne.s32.totalorder %s201, %s202
    %p216 = scmp.eq.s32.totalorder %s20, 31
    %p217 = por %p215, %p216
    %p219 = scmp.ne.s32.totalorder %s202, %s218
    %p220 = scmp.eq.s32.totalorder %s20, 0
    %p221 = por %p219, %p220
    %s222 = ssub.s32 %s22, %s36
    %p223 = scmp.eq.s32.totalorder %s222, 0
    %s225 = sadd.s32 %s224, 1
    %s226 = scalar_select %p223, %s224, %s225
    %p229 = pneg %p223
    %p230 = scmp.eq.s32.totalorder %s14, 31
    %p231 = por %p229, %p230
    %p232 = scmp.ne.s32.totalorder %s224, %s227
    %p233 = scmp.eq.s32.totalorder %s14, 0
    %p234 = por %p232, %p233
    %p235 = scmp.ne.s32.totalorder %s224, %s227
    %p236 = scmp.eq.s32.totalorder %s19, 31
    %p237 = por %p235, %p236
    %p238 = scmp.ne.s32.totalorder %s227, %s228
    %p239 = scmp.eq.s32.totalorder %s19, 0
    %p240 = por %p238, %p239
    %p241 = scmp.ne.s32.totalorder %s227, %s228
    %p242 = scmp.eq.s32.totalorder %s20, 31
    %p243 = por %p241, %p242
    %p245 = scmp.ne.s32.totalorder %s228, %s244
    %p246 = scmp.eq.s32.totalorder %s20, 0
    %p247 = por %p245, %p246
    %s248 = ssub.s32 %s21, %s40
    %p249 = scmp.eq.s32.totalorder %s248, 0
    %s251 = sadd.s32 %s250, 1
    %s252 = scalar_select %p249, %s250, %s251
    %p255 = pneg %p249
    %p256 = scmp.eq.s32.totalorder %s14, 31
    %p257 = por %p255, %p256
    %p258 = scmp.ne.s32.totalorder %s250, %s253
    %p259 = scmp.eq.s32.totalorder %s14, 0
    %p260 = por %p258, %p259
    %p261 = scmp.ne.s32.totalorder %s250, %s253
    %p262 = scmp.eq.s32.totalorder %s19, 31
    %p263 = por %p261, %p262
    %p264 = scmp.ne.s32.totalorder %s253, %s254
    %p265 = scmp.eq.s32.totalorder %s19, 0
    %p266 = por %p264, %p265
    %p267 = scmp.ne.s32.totalorder %s253, %s254
    %p268 = scmp.eq.s32.totalorder %s20, 31
    %p269 = por %p267, %p268
    %p271 = scmp.ne.s32.totalorder %s254, %s270
    %p272 = scmp.eq.s32.totalorder %s20, 0
    %p273 = por %p271, %p272
    %p274 = scmp.le.s32.totalorder 1, %s14
    %p275 = scmp.lt.s32.totalorder %s14, 33
    %p276 = pnand %p274, %p275
    %p277 = pneg %p276
    // Predicated region
    $region9: #{nice_forward.1} parent=5 // pred_check
      _
    $region10: #{nice_forward.1} parent=5 // pred_check_branch
      %279 = sbr.rel (%p276) target = $region12
    $region11: #{nice_forward.1} parent=5 // pred_region
      %s280 = ssub.s32 %s14, 1
      // Predicated region
      $region13: #{nice_forward.1} parent=11 // pred_check
        %p281 = pneg %p80
      $region14: #{nice_forward.1} parent=11 // pred_check_branch
        %283 = sbr.rel (%p281) target = $region16
      $region15: #{nice_forward.1} parent=11 // pred_region
        _
      $region16: #{nice_forward.1} parent=11 // pred_fallthru
        _
    $region12: #{nice_forward.1} parent=5 // pred_fallthru
      _
    %p284 = scmp.lt.s32.totalorder %s14, 32
    // Predicated region
    $region17: #{nice_forward.1} parent=5 // pred_check
      %p285 = pneg %p284
    $region18: #{nice_forward.1} parent=5 // pred_check_branch
      %287 = sbr.rel (%p285) target = $region20
    $region19: #{nice_forward.1} parent=5 // pred_region
      // Predicated region
      $region21: #{nice_forward.1} parent=19 // pred_check
        %p288 = pneg %p53
      $region22: #{nice_forward.1} parent=19 // pred_check_branch
        %290 = sbr.rel (%p288) target = $region24
      $region23: #{nice_forward.1} parent=19 // pred_region
        %s291 = smul.u32 16, %s21
        %p292 = scmp.lt.s32.totalorder %s291, 31
        %s293 = scalar_select %p292, %s291, 31
        %s294 = smul.addr %s293, 2
        %s295 = smul.addr %s294, 8
        %s296 = scalar_lea.vmem %s0, %s295
        %s297 = smul.u32 16, %s21
      $region24: #{nice_forward.1} parent=19 // pred_fallthru
        _
      // Predicated region
      $region25: #{nice_forward.1} parent=19 // pred_check
        %p298 = pneg %p100
      $region26: #{nice_forward.1} parent=19 // pred_check_branch
        %300 = sbr.rel (%p298) target = $region28
      $region27: #{nice_forward.1} parent=19 // pred_region
        %p301 = scmp.lt.s32.totalorder %s22, 3
        %s302 = scalar_select %p301, %s22, 3
        %s303 = smul.addr %s302, 32
        %s304 = smul.addr %s303, 4
        %s305 = scalar_lea.vmem %s2, %s304
      $region28: #{nice_forward.1} parent=19 // pred_fallthru
        _
      // Predicated region
      $region29: #{nice_forward.1} parent=19 // pred_check
        %p306 = pneg %p126
      $region30: #{nice_forward.1} parent=19 // pred_check_branch
        %308 = sbr.rel (%p306) target = $region32
      $region31: #{nice_forward.1} parent=19 // pred_region
        %p309 = scmp.lt.s32.totalorder %s22, 3
        %s310 = scalar_select %p309, %s22, 3
        %s311 = smul.addr %s310, 2
        %s312 = scalar_lea.vmem %s3, %s311
      $region32: #{nice_forward.1} parent=19 // pred_fallthru
        _
      // Predicated region
      $region33: #{nice_forward.1} parent=19 // pred_check
        %p313 = pneg %p154
      $region34: #{nice_forward.1} parent=19 // pred_check_branch
        %315 = sbr.rel (%p313) target = $region36
      $region35: #{nice_forward.1} parent=19 // pred_region
        %p316 = scmp.lt.s32.totalorder %s22, 3
        %s317 = scalar_select %p316, %s22, 3
        %p318 = scmp.lt.s32.totalorder %s23, 3
        %s319 = scalar_select %p318, %s23, 3
        %s320 = smul.addr %s319, 64
        %s321 = smul.addr %s317, 256
        %s322 = sadd.s32 %s320, %s321
        %s323 = smul.addr %s322, 4
        %s324 = scalar_lea.vmem %s4, %s323
      $region36: #{nice_forward.1} parent=19 // pred_fallthru
        _
      // Predicated region
      $region37: #{nice_forward.1} parent=19 // pred_check
        %p325 = pneg %p182
      $region38: #{nice_forward.1} parent=19 // pred_check_branch
        %327 = sbr.rel (%p325) target = $region40
      $region39: #{nice_forward.1} parent=19 // pred_region
        %p328 = scmp.lt.s32.totalorder %s22, 3
        %s329 = scalar_select %p328, %s22, 3
        %p330 = scmp.lt.s32.totalorder %s23, 3
        %s331 = scalar_select %p330, %s23, 3
        %s332 = smul.addr %s331, 2
        %s333 = smul.addr %s329, 8
        %s334 = sadd.s32 %s332, %s333
        %s335 = scalar_lea.vmem %s5, %s334
      $region40: #{nice_forward.1} parent=19 // pred_fallthru
        _
      // Predicated region
      $region41: #{nice_forward.1} parent=19 // pred_check
        %p336 = pneg %p208
      $region42: #{nice_forward.1} parent=19 // pred_check_branch
        %338 = sbr.rel (%p336) target = $region44
      $region43: #{nice_forward.1} parent=19 // pred_region
        %p339 = scmp.lt.s32.totalorder %s22, 3
        %s340 = scalar_select %p339, %s22, 3
        %s341 = smul.addr %s340, 32
        %s342 = smul.addr %s341, 4
        %s343 = scalar_lea.vmem %s6, %s342
      $region44: #{nice_forward.1} parent=19 // pred_fallthru
        _
      // Predicated region
      $region45: #{nice_forward.1} parent=19 // pred_check
        %p344 = pneg %p234
      $region46: #{nice_forward.1} parent=19 // pred_check_branch
        %346 = sbr.rel (%p344) target = $region48
      $region47: #{nice_forward.1} parent=19 // pred_region
        %p347 = scmp.lt.s32.totalorder %s22, 3
        %s348 = scalar_select %p347, %s22, 3
        %s349 = scalar_lea.vmem %s7, %s348
      $region48: #{nice_forward.1} parent=19 // pred_fallthru
        _
    $region20: #{nice_forward.1} parent=5 // pred_fallthru
      _
    %p350 = scmp.le.s32.totalorder 1, %s14
    %p351 = scmp.lt.s32.totalorder %s14, 33
    %p352 = pnand %p350, %p351
    %p353 = pneg %p352
    // Predicated region
    $region49: #{nice_forward.1} parent=5 // pred_check
      _
    $region50: #{nice_forward.1} parent=5 // pred_check_branch
      %355 = sbr.rel (%p352) target = $region52
    $region51: #{nice_forward.1} parent=5 // pred_region
      %s356 = ssub.s32 %s14, 1
      %s357 = smul.u32 16, %s24
      %p358 = scmp.lt.s32.totalorder %s357, 31
      %s359 = scalar_select %p358, %s357, 31
      %s360 = smul.addr %s359, 2
      %s361 = smul.addr %s360, 8
      %s362 = scalar_lea.vmem %s0, %s361
      %p363 = pneg %p59
      %p364 = pneg %p56
      %p365 = pneg %p80
      %p366 = pneg %p77
      %p367 = scmp.lt.s32.totalorder %s25, 3
      %s368 = scalar_select %p367, %s25, 3
      %s369 = smul.addr %s368, 32
      %s370 = smul.addr %s369, 4
      %s371 = scalar_lea.vmem %s2, %s370
      %p372 = pneg %p106
      %p373 = pneg %p103
      %p374 = scmp.lt.s32.totalorder %s25, 3
      %s375 = scalar_select %p374, %s25, 3
      %s376 = smul.addr %s375, 2
      %s377 = scalar_lea.vmem %s3, %s376
      %p378 = pneg %p132
      %p379 = pneg %p129
      %p380 = scmp.lt.s32.totalorder %s25, 3
      %s381 = scalar_select %p380, %s25, 3
      %p382 = scmp.lt.s32.totalorder %s26, 3
      %s383 = scalar_select %p382, %s26, 3
      %s384 = smul.addr %s383, 64
      %s385 = smul.addr %s381, 256
      %s386 = sadd.s32 %s384, %s385
      %s387 = smul.addr %s386, 4
      %s388 = scalar_lea.vmem %s4, %s387
      %p389 = pneg %p160
      %p390 = pneg %p157
      %p391 = scmp.lt.s32.totalorder %s25, 3
      %s392 = scalar_select %p391, %s25, 3
      %p393 = scmp.lt.s32.totalorder %s26, 3
      %s394 = scalar_select %p393, %s26, 3
      %s395 = smul.addr %s394, 2
      %s396 = smul.addr %s392, 8
      %s397 = sadd.s32 %s395, %s396
      %s398 = scalar_lea.vmem %s5, %s397
      %p399 = pneg %p188
      %p400 = pneg %p185
      %p401 = scmp.lt.s32.totalorder %s25, 3
      %s402 = scalar_select %p401, %s25, 3
      %s403 = smul.addr %s402, 32
      %s404 = smul.addr %s403, 4
      %s405 = scalar_lea.vmem %s6, %s404
      %p406 = pneg %p214
      %p407 = pneg %p211
      %p408 = scmp.lt.s32.totalorder %s25, 3
      %s409 = scalar_select %p408, %s25, 3
      %s410 = scalar_lea.vmem %s7, %s409
      %p411 = pneg %p240
      %p412 = pneg %p237
      %p413 = pneg %p266
      %p414 = pneg %p263
      %s415 = smul.u32 16, %s24
      %p416 = scmp.lt.s32.totalorder %s415, 31
      %s417 = scalar_select %p416, %s415, 31
      %s418 = smul.addr %s417, 2
      %s419 = smul.addr %s418, 8
      %s420 = scalar_lea.vmem %s8, %s419
      %s421 = smul.u32 16, %s24
      %p422 = scmp.lt.s32.totalorder %s421, 31
      %s423 = scalar_select %p422, %s421, 31
      %s424 = smul.addr %s423, 2
      %s425 = smul.addr %s424, 8
      %s426 = scalar_lea.vmem %s0, %s425
      %s427 = smul.u32 16, %s24
      %p428 = scmp.lt.s32.totalorder %s25, 3
      %s429 = scalar_select %p428, %s25, 3
      %s430 = smul.addr %s429, 32
      %s431 = smul.addr %s430, 4
      %s432 = scalar_lea.vmem %s2, %s431
      %p433 = scmp.lt.s32.totalorder %s25, 3
      %s434 = scalar_select %p433, %s25, 3
      %s435 = smul.addr %s434, 2
      %s436 = scalar_lea.vmem %s3, %s435
      %p437 = scmp.lt.s32.totalorder %s25, 3
      %s438 = scalar_select %p437, %s25, 3
      %p439 = scmp.lt.s32.totalorder %s26, 3
      %s440 = scalar_select %p439, %s26, 3
      %s441 = smul.addr %s440, 64
      %s442 = smul.addr %s438, 256
      %s443 = sadd.s32 %s441, %s442
      %s444 = smul.addr %s443, 4
      %s445 = scalar_lea.vmem %s4, %s444
      %p446 = scmp.lt.s32.totalorder %s25, 3
      %s447 = scalar_select %p446, %s25, 3
      %p448 = scmp.lt.s32.totalorder %s26, 3
      %s449 = scalar_select %p448, %s26, 3
      %s450 = smul.addr %s449, 2
      %s451 = smul.addr %s447, 8
      %s452 = sadd.s32 %s450, %s451
      %s453 = scalar_lea.vmem %s5, %s452
      %p454 = scmp.lt.s32.totalorder %s25, 3
      %s455 = scalar_select %p454, %s25, 3
      %s456 = smul.addr %s455, 32
      %s457 = smul.addr %s456, 4
      %s458 = scalar_lea.vmem %s6, %s457
      %p459 = scmp.lt.s32.totalorder %s25, 3
      %s460 = scalar_select %p459, %s25, 3
      %s461 = scalar_lea.vmem %s7, %s460
      %s462 = smul.u32 16, %s24
      %p463 = scmp.lt.s32.totalorder %s462, 31
      %s464 = scalar_select %p463, %s462, 31
      %s465 = smul.addr %s464, 2
      %s466 = smul.addr %s465, 8
      %s467 = scalar_lea.vmem %s8, %s466
      %s468 = smul.u32 16, %s24
      %p469 = scmp.lt.s32.totalorder %s25, 0
      %s470 = ssub.s32 0, %s25
      %s471 = scalar_select %p469, %s470, %s25
      %s472 = sand.u32 %s471, 1
      %s473 = ssub.s32 0, %s472
      %s474 = scalar_select %p469, %s473, %s472
      %p475 = scmp.ne.s32.totalorder %s474, 0
      %p476 = scmp.lt.s32.totalorder %s474, 0
      %p477 = pnand %p476, %p475
      %p478 = pneg %p477
      %s479 = sadd.s32 %s474, 2
      %s480 = scalar_select %p478, %s479, %s474
      %p481 = scmp.eq.s32.totalorder %s480, 0
      %p482 = scmp.eq.s32.totalorder %s25, 0
      %p483 = scmp.eq.s32.totalorder %s26, 0
      %p484 = pnand %p482, %p483
      %p485 = pneg %p484
      // Predicated region
      $region53: #{nice_forward.1} parent=51 // pred_check
        _
      $region54: #{nice_forward.1} parent=51 // pred_check_branch
        %487 = sbr.rel (%p484) target = $region56
      $region55: #{nice_forward.1} parent=51 // pred_region
        %v488 = vld [vmem:[%s426] sm:$0xff]
        %v489 = vld [vmem:[%s426 + $0x10] sm:$0xff]
        %v490 = vld [vmem:[%s426 + $0x20] sm:$0xff]
        %v491 = vld [vmem:[%s426 + $0x30] sm:$0xff]
        %v492 = vld [vmem:[%s426 + $0x40] sm:$0xff]
        %v493 = vld [vmem:[%s426 + $0x50] sm:$0xff]
        %v494 = vld [vmem:[%s426 + $0x60] sm:$0xff]
        %v495 = vld [vmem:[%s426 + $0x70] sm:$0xff]
        %v496 = vld [vmem:[%s426 + $0x80] sm:$0xff]
        %v497 = vld [vmem:[%s426 + $0x90] sm:$0xff]
        %v498 = vld [vmem:[%s426 + $0xa0] sm:$0xff]
        %v499 = vld [vmem:[%s426 + $0xb0] sm:$0xff]
        %v500 = vld [vmem:[%s426 + $0xc0] sm:$0xff]
        %v501 = vld [vmem:[%s426 + $0xd0] sm:$0xff]
        %v502 = vld [vmem:[%s426 + $0xe0] sm:$0xff]
        %v503 = vld [vmem:[%s426 + $0xf0] sm:$0xff]
        %504 = vst [vmem:[#allocation2] sm:$0xff] %v488
        %505 = vst [vmem:[#allocation2 + $0x8] sm:$0xff] %v489
        %506 = vst [vmem:[#allocation2 + $0x10] sm:$0xff] %v490
        %507 = vst [vmem:[#allocation2 + $0x18] sm:$0xff] %v491
        %508 = vst [vmem:[#allocation2 + $0x20] sm:$0xff] %v492
        %509 = vst [vmem:[#allocation2 + $0x28] sm:$0xff] %v493
        %510 = vst [vmem:[#allocation2 + $0x30] sm:$0xff] %v494
        %511 = vst [vmem:[#allocation2 + $0x38] sm:$0xff] %v495
        %512 = vst [vmem:[#allocation2 + $0x40] sm:$0xff] %v496
        %513 = vst [vmem:[#allocation2 + $0x48] sm:$0xff] %v497
        %514 = vst [vmem:[#allocation2 + $0x50] sm:$0xff] %v498
        %515 = vst [vmem:[#allocation2 + $0x58] sm:$0xff] %v499
        %516 = vst [vmem:[#allocation2 + $0x60] sm:$0xff] %v500
        %517 = vst [vmem:[#allocation2 + $0x68] sm:$0xff] %v501
        %518 = vst [vmem:[#allocation2 + $0x70] sm:$0xff] %v502
        %519 = vst [vmem:[#allocation2 + $0x78] sm:$0xff] %v503
        %v520 = vld [vmem:[%s426 + $0x8] sm:$0xff]
        %v521 = vld [vmem:[%s426 + $0x18] sm:$0xff]
        %v522 = vld [vmem:[%s426 + $0x28] sm:$0xff]
        %v523 = vld [vmem:[%s426 + $0x38] sm:$0xff]
        %v524 = vld [vmem:[%s426 + $0x48] sm:$0xff]
        %v525 = vld [vmem:[%s426 + $0x58] sm:$0xff]
        %v526 = vld [vmem:[%s426 + $0x68] sm:$0xff]
        %v527 = vld [vmem:[%s426 + $0x78] sm:$0xff]
        %v528 = vld [vmem:[%s426 + $0x88] sm:$0xff]
        %v529 = vld [vmem:[%s426 + $0x98] sm:$0xff]
        %v530 = vld [vmem:[%s426 + $0xa8] sm:$0xff]
        %v531 = vld [vmem:[%s426 + $0xb8] sm:$0xff]
        %v532 = vld [vmem:[%s426 + $0xc8] sm:$0xff]
        %v533 = vld [vmem:[%s426 + $0xd8] sm:$0xff]
        %v534 = vld [vmem:[%s426 + $0xe8] sm:$0xff]
        %v535 = vld [vmem:[%s426 + $0xf8] sm:$0xff]
        %536 = vst [vmem:[#allocation3] sm:$0xff] %v520
        %537 = vst [vmem:[#allocation3 + $0x8] sm:$0xff] %v521
        %538 = vst [vmem:[#allocation3 + $0x10] sm:$0xff] %v522
        %539 = vst [vmem:[#allocation3 + $0x18] sm:$0xff] %v523
        %540 = vst [vmem:[#allocation3 + $0x20] sm:$0xff] %v524
        %541 = vst [vmem:[#allocation3 + $0x28] sm:$0xff] %v525
        %542 = vst [vmem:[#allocation3 + $0x30] sm:$0xff] %v526
        %543 = vst [vmem:[#allocation3 + $0x38] sm:$0xff] %v527
        %544 = vst [vmem:[#allocation3 + $0x40] sm:$0xff] %v528
        %545 = vst [vmem:[#allocation3 + $0x48] sm:$0xff] %v529
        %546 = vst [vmem:[#allocation3 + $0x50] sm:$0xff] %v530
        %547 = vst [vmem:[#allocation3 + $0x58] sm:$0xff] %v531
        %548 = vst [vmem:[#allocation3 + $0x60] sm:$0xff] %v532
        %549 = vst [vmem:[#allocation3 + $0x68] sm:$0xff] %v533
        %550 = vst [vmem:[#allocation3 + $0x70] sm:$0xff] %v534
        %551 = vst [vmem:[#allocation3 + $0x78] sm:$0xff] %v535
      $region56: #{nice_forward.1} parent=51 // pred_fallthru
        _
      // Predicated region
      $region57: #{nice_forward.1} parent=51 // pred_check
        %p552 = pneg %p483
      $region58: #{nice_forward.1} parent=51 // pred_check_branch
        %554 = sbr.rel (%p552) target = $region60
      $region59: #{nice_forward.1} parent=51 // pred_region
        %v555 = vld [vmem:[#allocation2] sm:$0xff]
        %v556 = vld [vmem:[#allocation2 + $0x8] sm:$0xff]
        %v557 = vld [vmem:[#allocation2 + $0x10] sm:$0xff]
        %v558 = vld [vmem:[#allocation2 + $0x18] sm:$0xff]
        %v559 = vld [vmem:[#allocation2 + $0x20] sm:$0xff]
        %v560 = vld [vmem:[#allocation2 + $0x28] sm:$0xff]
        %v561 = vld [vmem:[#allocation2 + $0x30] sm:$0xff]
        %v562 = vld [vmem:[#allocation2 + $0x38] sm:$0xff]
        %v563 = vld [vmem:[#allocation2 + $0x40] sm:$0xff]
        %v564 = vld [vmem:[#allocation2 + $0x48] sm:$0xff]
        %v565 = vld [vmem:[#allocation2 + $0x50] sm:$0xff]
        %v566 = vld [vmem:[#allocation2 + $0x58] sm:$0xff]
        %v567 = vld [vmem:[#allocation2 + $0x60] sm:$0xff]
        %v568 = vld [vmem:[#allocation2 + $0x68] sm:$0xff]
        %v569 = vld [vmem:[#allocation2 + $0x70] sm:$0xff]
        %v570 = vld [vmem:[#allocation2 + $0x78] sm:$0xff]
        %v571 = vld [vmem:[#allocation3] sm:$0xff]
        %v572 = vld [vmem:[#allocation3 + $0x8] sm:$0xff]
        %v573 = vld [vmem:[#allocation3 + $0x10] sm:$0xff]
        %v574 = vld [vmem:[#allocation3 + $0x18] sm:$0xff]
        %v575 = vld [vmem:[#allocation3 + $0x20] sm:$0xff]
        %v576 = vld [vmem:[#allocation3 + $0x28] sm:$0xff]
        %v577 = vld [vmem:[#allocation3 + $0x30] sm:$0xff]
        %v578 = vld [vmem:[#allocation3 + $0x38] sm:$0xff]
        %v579 = vld [vmem:[#allocation3 + $0x40] sm:$0xff]
        %v580 = vld [vmem:[#allocation3 + $0x48] sm:$0xff]
        %v581 = vld [vmem:[#allocation3 + $0x50] sm:$0xff]
        %v582 = vld [vmem:[#allocation3 + $0x58] sm:$0xff]
        %v583 = vld [vmem:[#allocation3 + $0x60] sm:$0xff]
        %v584 = vld [vmem:[#allocation3 + $0x68] sm:$0xff]
        %v585 = vld [vmem:[#allocation3 + $0x70] sm:$0xff]
        %v586 = vld [vmem:[#allocation3 + $0x78] sm:$0xff]
        %s587 = scalar_select %p481, 1, 0
        %v588 = vstv %s587
        %vm589 = vcmp.eq.s32.totalorder %v588, 1
        %v590 = vsel %vm589, %v555, %v571
        %v591 = vsel %vm589, %v556, %v572
        %v592 = vsel %vm589, %v557, %v573
        %v593 = vsel %vm589, %v558, %v574
        %v594 = vsel %vm589, %v559, %v575
        %v595 = vsel %vm589, %v560, %v576
        %v596 = vsel %vm589, %v561, %v577
        %v597 = vsel %vm589, %v562, %v578
        %v598 = vsel %vm589, %v563, %v579
        %v599 = vsel %vm589, %v564, %v580
        %v600 = vsel %vm589, %v565, %v581
        %v601 = vsel %vm589, %v566, %v582
        %v602 = vsel %vm589, %v567, %v583
        %v603 = vsel %vm589, %v568, %v584
        %v604 = vsel %vm589, %v569, %v585
        %v605 = vsel %vm589, %v570, %v586
        %v606 = vpack.c.bf16 %v591, %v590
        %v607 = vpack.c.bf16 %v593, %v592
        %v608 = vpack.c.bf16 %v595, %v594
        %v609 = vpack.c.bf16 %v597, %v596
        %v610 = vpack.c.bf16 %v599, %v598
        %v611 = vpack.c.bf16 %v601, %v600
        %v612 = vpack.c.bf16 %v603, %v602
        %v613 = vpack.c.bf16 %v605, %v604
        %v614 = vld [vmem:[%s432] sm:$0xff]
        %v615 = vld [vmem:[%s432 + $0x8] sm:$0xff]
        %v616 = vld [vmem:[%s432 + $0x10] sm:$0xff]
        %v617 = vld [vmem:[%s432 + $0x18] sm:$0xff]
        %v618 = vld [vmem:[%s432 + $0x20] sm:$0xff]
        %v619 = vld [vmem:[%s432 + $0x28] sm:$0xff]
        %v620 = vld [vmem:[%s432 + $0x30] sm:$0xff]
        %v621 = vld [vmem:[%s432 + $0x38] sm:$0xff]
        %v622 = vld [vmem:[%s432 + $0x40] sm:$0xff]
        %v623 = vld [vmem:[%s432 + $0x48] sm:$0xff]
        %v624 = vld [vmem:[%s432 + $0x50] sm:$0xff]
        %v625 = vld [vmem:[%s432 + $0x58] sm:$0xff]
        %v626 = vld [vmem:[%s432 + $0x60] sm:$0xff]
        %v627 = vld [vmem:[%s432 + $0x68] sm:$0xff]
        %v628 = vld [vmem:[%s432 + $0x70] sm:$0xff]
        %v629 = vld [vmem:[%s432 + $0x78] sm:$0xff]
        %v630 = vld [vmem:[%s436] sm:$0x3]
        %v632 = vperm.slane %v630, 0
        %v633 = vperm.slane %v630, 1
        %v652 = vunpack.c.l.b16 %v614
        %v653 = vunpack.c.h.b16 %v614
        %v654 = vunpack.c.l.b16 %v615
        %v655 = vunpack.c.h.b16 %v615
        %v656 = vunpack.c.l.b16 %v616
        %v657 = vunpack.c.h.b16 %v616
        %v658 = vunpack.c.l.b16 %v617
        %v659 = vunpack.c.h.b16 %v617
        %v660 = vunpack.c.l.b16 %v618
        %v661 = vunpack.c.h.b16 %v618
        %v662 = vunpack.c.l.b16 %v619
        %v663 = vunpack.c.h.b16 %v619
        %v664 = vunpack.c.l.b16 %v620
        %v665 = vunpack.c.h.b16 %v620
        %v666 = vunpack.c.l.b16 %v621
        %v667 = vunpack.c.h.b16 %v621
        %v668 = vunpack.c.l.b16 %v622
        %v669 = vunpack.c.h.b16 %v622
        %v670 = vunpack.c.l.b16 %v623
        %v671 = vunpack.c.h.b16 %v623
        %v672 = vunpack.c.l.b16 %v624
        %v673 = vunpack.c.h.b16 %v624
        %v674 = vunpack.c.l.b16 %v625
        %v675 = vunpack.c.h.b16 %v625
        %v676 = vunpack.c.l.b16 %v626
        %v677 = vunpack.c.h.b16 %v626
        %v678 = vunpack.c.l.b16 %v627
        %v679 = vunpack.c.h.b16 %v627
        %v680 = vunpack.c.l.b16 %v628
        %v681 = vunpack.c.h.b16 %v628
        %v682 = vunpack.c.l.b16 %v629
        %v683 = vunpack.c.h.b16 %v629
        %v684 = vpack.c.b16 %v654, %v652
        %v685 = vpack.c.b16 %v655, %v653
        %v686 = vpack.c.b16 %v658, %v656
        %v687 = vpack.c.b16 %v659, %v657
        %v688 = vpack.c.b16 %v662, %v660
        %v689 = vpack.c.b16 %v663, %v661
        %v690 = vpack.c.b16 %v666, %v664
        %v691 = vpack.c.b16 %v667, %v665
        %v692 = vpack.c.b16 %v670, %v668
        %v693 = vpack.c.b16 %v671, %v669
        %v694 = vpack.c.b16 %v674, %v672
        %v695 = vpack.c.b16 %v675, %v673
        %v696 = vpack.c.b16 %v678, %v676
        %v697 = vpack.c.b16 %v679, %v677
        %v698 = vpack.c.b16 %v682, %v680
        %v699 = vpack.c.b16 %v683, %v681
        %716 = vmatpush.bf16.msra.mxu0 %v698
        %717 = vmatpush.bf16.msra.mxu0 %v696
        %718 = vmatpush.bf16.msra.mxu0 %v694
        %719 = vmatpush.bf16.msra.mxu0 %v692
        %720 = vmatpush.bf16.msra.mxu0 %v690
        %721 = vmatpush.bf16.msra.mxu0 %v688
        %722 = vmatpush.bf16.msra.mxu0 %v686
        %723 = vmatpush.bf16.msra.mxu0 %v684
        %724 = vmatmul.bf16.gmra.mxu0 %v606
        %v725 = vpop.f32.mrf.mxu0
        %v726 = vadd.f32 %v632, %v725
        %v727 = vpop.f32.mrf.mxu0
        %v728 = vadd.f32 %v632, %v727
        %729 = vmatmul.bf16.gmra.mxu0 %v607
        %v730 = vpop.f32.mrf.mxu0
        %v731 = vadd.f32 %v632, %v730
        %v732 = vpop.f32.mrf.mxu0
        %v733 = vadd.f32 %v632, %v732
        %734 = vmatmul.bf16.gmra.mxu0 %v608
        %v735 = vpop.f32.mrf.mxu0
        %v736 = vadd.f32 %v632, %v735
        %v737 = vpop.f32.mrf.mxu0
        %v738 = vadd.f32 %v632, %v737
        %739 = vmatmul.bf16.gmra.mxu0 %v609
        %v740 = vpop.f32.mrf.mxu0
        %v741 = vadd.f32 %v632, %v740
        %v742 = vpop.f32.mrf.mxu0
        %v743 = vadd.f32 %v632, %v742
        %744 = vmatmul.bf16.gmra.mxu0 %v610
        %v745 = vpop.f32.mrf.mxu0
        %v746 = vadd.f32 %v632, %v745
        %v747 = vpop.f32.mrf.mxu0
        %v748 = vadd.f32 %v632, %v747
        %749 = vmatmul.bf16.gmra.mxu0 %v611
        %v750 = vpop.f32.mrf.mxu0
        %v751 = vadd.f32 %v632, %v750
        %v752 = vpop.f32.mrf.mxu0
        %v753 = vadd.f32 %v632, %v752
        %754 = vmatmul.bf16.gmra.mxu0 %v612
        %v755 = vpop.f32.mrf.mxu0
        %v756 = vadd.f32 %v632, %v755
        %v757 = vpop.f32.mrf.mxu0
        %v758 = vadd.f32 %v632, %v757
        %759 = vmatmul.bf16.gmra.mxu0 %v613
        %v760 = vpop.f32.mrf.mxu0
        %v761 = vadd.f32 %v632, %v760
        %v762 = vpop.f32.mrf.mxu0
        %v763 = vadd.f32 %v632, %v762
        %764 = vdwg.mxu0
        %765 = vmatpush.bf16.msra.mxu0 %v699
        %766 = vmatpush.bf16.msra.mxu0 %v697
        %767 = vmatpush.bf16.msra.mxu0 %v695
        %768 = vmatpush.bf16.msra.mxu0 %v693
        %769 = vmatpush.bf16.msra.mxu0 %v691
        %770 = vmatpush.bf16.msra.mxu0 %v689
        %771 = vmatpush.bf16.msra.mxu0 %v687
        %772 = vmatpush.bf16.msra.mxu0 %v685
        %773 = vmatmul.bf16.gmra.mxu0 %v606
        %v774 = vpop.f32.mrf.mxu0
        %v775 = vadd.f32 %v633, %v774
        %v776 = vpop.f32.mrf.mxu0
        %v777 = vadd.f32 %v633, %v776
        %778 = vmatmul.bf16.gmra.mxu0 %v607
        %v779 = vpop.f32.mrf.mxu0
        %v780 = vadd.f32 %v633, %v779
        %v781 = vpop.f32.mrf.mxu0
        %v782 = vadd.f32 %v633, %v781
        %783 = vmatmul.bf16.gmra.mxu0 %v608
        %v784 = vpop.f32.mrf.mxu0
        %v785 = vadd.f32 %v633, %v784
        %v786 = vpop.f32.mrf.mxu0
        %v787 = vadd.f32 %v633, %v786
        %788 = vmatmul.bf16.gmra.mxu0 %v609
        %v789 = vpop.f32.mrf.mxu0
        %v790 = vadd.f32 %v633, %v789
        %v791 = vpop.f32.mrf.mxu0
        %v792 = vadd.f32 %v633, %v791
        %793 = vmatmul.bf16.gmra.mxu0 %v610
        %v794 = vpop.f32.mrf.mxu0
        %v795 = vadd.f32 %v633, %v794
        %v796 = vpop.f32.mrf.mxu0
        %v797 = vadd.f32 %v633, %v796
        %798 = vmatmul.bf16.gmra.mxu0 %v611
        %v799 = vpop.f32.mrf.mxu0
        %v800 = vadd.f32 %v633, %v799
        %v801 = vpop.f32.mrf.mxu0
        %v802 = vadd.f32 %v633, %v801
        %803 = vmatmul.bf16.gmra.mxu0 %v612
        %v804 = vpop.f32.mrf.mxu0
        %v805 = vadd.f32 %v633, %v804
        %v806 = vpop.f32.mrf.mxu0
        %v807 = vadd.f32 %v633, %v806
        %808 = vmatmul.bf16.gmra.mxu0 %v613
        %v809 = vpop.f32.mrf.mxu0
        %v810 = vadd.f32 %v633, %v809
        %v811 = vpop.f32.mrf.mxu0
        %v812 = vadd.f32 %v633, %v811
        %813 = vdwg.mxu0
        %v814 = vmax.f32 %v726, 0.0
        %v815 = vmax.f32 %v775, 0.0
        %v816 = vmax.f32 %v728, 0.0
        %v817 = vmax.f32 %v777, 0.0
        %v818 = vmax.f32 %v731, 0.0
        %v819 = vmax.f32 %v780, 0.0
        %v820 = vmax.f32 %v733, 0.0
        %v821 = vmax.f32 %v782, 0.0
        %v822 = vmax.f32 %v736, 0.0
        %v823 = vmax.f32 %v785, 0.0
        %v824 = vmax.f32 %v738, 0.0
        %v825 = vmax.f32 %v787, 0.0
        %v826 = vmax.f32 %v741, 0.0
        %v827 = vmax.f32 %v790, 0.0
        %v828 = vmax.f32 %v743, 0.0
        %v829 = vmax.f32 %v792, 0.0
        %v830 = vmax.f32 %v746, 0.0
        %v831 = vmax.f32 %v795, 0.0
        %v832 = vmax.f32 %v748, 0.0
        %v833 = vmax.f32 %v797, 0.0
        %v834 = vmax.f32 %v751, 0.0
        %v835 = vmax.f32 %v800, 0.0
        %v836 = vmax.f32 %v753, 0.0
        %v837 = vmax.f32 %v802, 0.0
        %v838 = vmax.f32 %v756, 0.0
        %v839 = vmax.f32 %v805, 0.0
        %v840 = vmax.f32 %v758, 0.0
        %v841 = vmax.f32 %v807, 0.0
        %v842 = vmax.f32 %v761, 0.0
        %v843 = vmax.f32 %v810, 0.0
        %v844 = vmax.f32 %v763, 0.0
        %v845 = vmax.f32 %v812, 0.0
        %846 = vst [vmem:[#allocation4] sm:$0xff] %v814
        %847 = vst [vmem:[#allocation4 + $0x8] sm:$0xff] %v815
        %848 = vst [vmem:[#allocation4 + $0x10] sm:$0xff] %v816
        %849 = vst [vmem:[#allocation4 + $0x18] sm:$0xff] %v817
        %850 = vst [vmem:[#allocation4 + $0x20] sm:$0xff] %v818
        %851 = vst [vmem:[#allocation4 + $0x28] sm:$0xff] %v819
        %852 = vst [vmem:[#allocation4 + $0x30] sm:$0xff] %v820
        %853 = vst [vmem:[#allocation4 + $0x38] sm:$0xff] %v821
        %854 = vst [vmem:[#allocation4 + $0x40] sm:$0xff] %v822
        %855 = vst [vmem:[#allocation4 + $0x48] sm:$0xff] %v823
        %856 = vst [vmem:[#allocation4 + $0x50] sm:$0xff] %v824
        %857 = vst [vmem:[#allocation4 + $0x58] sm:$0xff] %v825
        %858 = vst [vmem:[#allocation4 + $0x60] sm:$0xff] %v826
        %859 = vst [vmem:[#allocation4 + $0x68] sm:$0xff] %v827
        %860 = vst [vmem:[#allocation4 + $0x70] sm:$0xff] %v828
        %861 = vst [vmem:[#allocation4 + $0x78] sm:$0xff] %v829
        %862 = vst [vmem:[#allocation4 + $0x80] sm:$0xff] %v830
        %863 = vst [vmem:[#allocation4 + $0x88] sm:$0xff] %v831
        %864 = vst [vmem:[#allocation4 + $0x90] sm:$0xff] %v832
        %865 = vst [vmem:[#allocation4 + $0x98] sm:$0xff] %v833
        %866 = vst [vmem:[#allocation4 + $0xa0] sm:$0xff] %v834
        %867 = vst [vmem:[#allocation4 + $0xa8] sm:$0xff] %v835
        %868 = vst [vmem:[#allocation4 + $0xb0] sm:$0xff] %v836
        %869 = vst [vmem:[#allocation4 + $0xb8] sm:$0xff] %v837
        %870 = vst [vmem:[#allocation4 + $0xc0] sm:$0xff] %v838
        %871 = vst [vmem:[#allocation4 + $0xc8] sm:$0xff] %v839
        %872 = vst [vmem:[#allocation4 + $0xd0] sm:$0xff] %v840
        %873 = vst [vmem:[#allocation4 + $0xd8] sm:$0xff] %v841
        %874 = vst [vmem:[#allocation4 + $0xe0] sm:$0xff] %v842
        %875 = vst [vmem:[#allocation4 + $0xe8] sm:$0xff] %v843
        %876 = vst [vmem:[#allocation4 + $0xf0] sm:$0xff] %v844
        %877 = vst [vmem:[#allocation4 + $0xf8] sm:$0xff] %v845
      $region60: #{nice_forward.1} parent=51 // pred_fallthru
        _
      %v878 = vld [vmem:[#allocation4] sm:$0xff]
      %v879 = vld [vmem:[#allocation4 + $0x8] sm:$0xff]
      %v880 = vld [vmem:[#allocation4 + $0x10] sm:$0xff]
      %v881 = vld [vmem:[#allocation4 + $0x18] sm:$0xff]
      %v882 = vld [vmem:[#allocation4 + $0x20] sm:$0xff]
      %v883 = vld [vmem:[#allocation4 + $0x28] sm:$0xff]
      %v884 = vld [vmem:[#allocation4 + $0x30] sm:$0xff]
      %v885 = vld [vmem:[#allocation4 + $0x38] sm:$0xff]
      %v886 = vld [vmem:[#allocation4 + $0x40] sm:$0xff]
      %v887 = vld [vmem:[#allocation4 + $0x48] sm:$0xff]
      %v888 = vld [vmem:[#allocation4 + $0x50] sm:$0xff]
      %v889 = vld [vmem:[#allocation4 + $0x58] sm:$0xff]
      %v890 = vld [vmem:[#allocation4 + $0x60] sm:$0xff]
      %v891 = vld [vmem:[#allocation4 + $0x68] sm:$0xff]
      %v892 = vld [vmem:[#allocation4 + $0x70] sm:$0xff]
      %v893 = vld [vmem:[#allocation4 + $0x78] sm:$0xff]
      %v894 = vld [vmem:[#allocation4 + $0x80] sm:$0xff]
      %v895 = vld [vmem:[#allocation4 + $0x88] sm:$0xff]
      %v896 = vld [vmem:[#allocation4 + $0x90] sm:$0xff]
      %v897 = vld [vmem:[#allocation4 + $0x98] sm:$0xff]
      %v898 = vld [vmem:[#allocation4 + $0xa0] sm:$0xff]
      %v899 = vld [vmem:[#allocation4 + $0xa8] sm:$0xff]
      %v900 = vld [vmem:[#allocation4 + $0xb0] sm:$0xff]
      %v901 = vld [vmem:[#allocation4 + $0xb8] sm:$0xff]
      %v902 = vld [vmem:[#allocation4 + $0xc0] sm:$0xff]
      %v903 = vld [vmem:[#allocation4 + $0xc8] sm:$0xff]
      %v904 = vld [vmem:[#allocation4 + $0xd0] sm:$0xff]
      %v905 = vld [vmem:[#allocation4 + $0xd8] sm:$0xff]
      %v906 = vld [vmem:[#allocation4 + $0xe0] sm:$0xff]
      %v907 = vld [vmem:[#allocation4 + $0xe8] sm:$0xff]
      %v908 = vld [vmem:[#allocation4 + $0xf0] sm:$0xff]
      %v909 = vld [vmem:[#allocation4 + $0xf8] sm:$0xff]
      %v910 = vpack.c.bf16 %v880, %v878
      %v911 = vpack.c.bf16 %v881, %v879
      %v912 = vpack.c.bf16 %v884, %v882
      %v913 = vpack.c.bf16 %v885, %v883
      %v914 = vpack.c.bf16 %v888, %v886
      %v915 = vpack.c.bf16 %v889, %v887
      %v916 = vpack.c.bf16 %v892, %v890
      %v917 = vpack.c.bf16 %v893, %v891
      %v918 = vpack.c.bf16 %v896, %v894
      %v919 = vpack.c.bf16 %v897, %v895
      %v920 = vpack.c.bf16 %v900, %v898
      %v921 = vpack.c.bf16 %v901, %v899
      %v922 = vpack.c.bf16 %v904, %v902
      %v923 = vpack.c.bf16 %v905, %v903
      %v924 = vpack.c.bf16 %v908, %v906
      %v925 = vpack.c.bf16 %v909, %v907
      %v926 = vld [vmem:[%s445] sm:$0xff]
      %v927 = vld [vmem:[%s445 + $0x8] sm:$0xff]
      %v928 = vld [vmem:[%s445 + $0x10] sm:$0xff]
      %v929 = vld [vmem:[%s445 + $0x18] sm:$0xff]
      %v930 = vld [vmem:[%s445 + $0x20] sm:$0xff]
      %v931 = vld [vmem:[%s445 + $0x28] sm:$0xff]
      %v932 = vld [vmem:[%s445 + $0x30] sm:$0xff]
      %v933 = vld [vmem:[%s445 + $0x38] sm:$0xff]
      %v934 = vld [vmem:[%s445 + $0x40] sm:$0xff]
      %v935 = vld [vmem:[%s445 + $0x48] sm:$0xff]
      %v936 = vld [vmem:[%s445 + $0x50] sm:$0xff]
      %v937 = vld [vmem:[%s445 + $0x58] sm:$0xff]
      %v938 = vld [vmem:[%s445 + $0x60] sm:$0xff]
      %v939 = vld [vmem:[%s445 + $0x68] sm:$0xff]
      %v940 = vld [vmem:[%s445 + $0x70] sm:$0xff]
      %v941 = vld [vmem:[%s445 + $0x78] sm:$0xff]
      %v942 = vld [vmem:[%s445 + $0x80] sm:$0xff]
      %v943 = vld [vmem:[%s445 + $0x88] sm:$0xff]
      %v944 = vld [vmem:[%s445 + $0x90] sm:$0xff]
      %v945 = vld [vmem:[%s445 + $0x98] sm:$0xff]
      %v946 = vld [vmem:[%s445 + $0xa0] sm:$0xff]
      %v947 = vld [vmem:[%s445 + $0xa8] sm:$0xff]
      %v948 = vld [vmem:[%s445 + $0xb0] sm:$0xff]
      %v949 = vld [vmem:[%s445 + $0xb8] sm:$0xff]
      %v950 = vld [vmem:[%s445 + $0xc0] sm:$0xff]
      %v951 = vld [vmem:[%s445 + $0xc8] sm:$0xff]
      %v952 = vld [vmem:[%s445 + $0xd0] sm:$0xff]
      %v953 = vld [vmem:[%s445 + $0xd8] sm:$0xff]
      %v954 = vld [vmem:[%s445 + $0xe0] sm:$0xff]
      %v955 = vld [vmem:[%s445 + $0xe8] sm:$0xff]
      %v956 = vld [vmem:[%s445 + $0xf0] sm:$0xff]
      %v957 = vld [vmem:[%s445 + $0xf8] sm:$0xff]
      %v958 = vld [vmem:[%s453] sm:$0x3]
      %v960 = vperm.slane %v958, 0
      %v961 = vperm.slane %v958, 1
      %v996 = vunpack.c.l.b16 %v926
      %v997 = vunpack.c.h.b16 %v926
      %v998 = vunpack.c.l.b16 %v927
      %v999 = vunpack.c.h.b16 %v927
      %v1000 = vunpack.c.l.b16 %v928
      %v1001 = vunpack.c.h.b16 %v928
      %v1002 = vunpack.c.l.b16 %v929
      %v1003 = vunpack.c.h.b16 %v929
      %v1004 = vunpack.c.l.b16 %v930
      %v1005 = vunpack.c.h.b16 %v930
      %v1006 = vunpack.c.l.b16 %v931
      %v1007 = vunpack.c.h.b16 %v931
      %v1008 = vunpack.c.l.b16 %v932
      %v1009 = vunpack.c.h.b16 %v932
      %v1010 = vunpack.c.l.b16 %v933
      %v1011 = vunpack.c.h.b16 %v933
      %v1012 = vunpack.c.l.b16 %v934
      %v1013 = vunpack.c.h.b16 %v934
      %v1014 = vunpack.c.l.b16 %v935
      %v1015 = vunpack.c.h.b16 %v935
      %v1016 = vunpack.c.l.b16 %v936
      %v1017 = vunpack.c.h.b16 %v936
      %v1018 = vunpack.c.l.b16 %v937
      %v1019 = vunpack.c.h.b16 %v937
      %v1020 = vunpack.c.l.b16 %v938
      %v1021 = vunpack.c.h.b16 %v938
      %v1022 = vunpack.c.l.b16 %v939
      %v1023 = vunpack.c.h.b16 %v939
      %v1024 = vunpack.c.l.b16 %v940
      %v1025 = vunpack.c.h.b16 %v940
      %v1026 = vunpack.c.l.b16 %v941
      %v1027 = vunpack.c.h.b16 %v941
      %v1028 = vunpack.c.l.b16 %v942
      %v1029 = vunpack.c.h.b16 %v942
      %v1030 = vunpack.c.l.b16 %v943
      %v1031 = vunpack.c.h.b16 %v943
      %v1032 = vunpack.c.l.b16 %v944
      %v1033 = vunpack.c.h.b16 %v944
      %v1034 = vunpack.c.l.b16 %v945
      %v1035 = vunpack.c.h.b16 %v945
      %v1036 = vunpack.c.l.b16 %v946
      %v1037 = vunpack.c.h.b16 %v946
      %v1038 = vunpack.c.l.b16 %v947
      %v1039 = vunpack.c.h.b16 %v947
      %v1040 = vunpack.c.l.b16 %v948
      %v1041 = vunpack.c.h.b16 %v948
      %v1042 = vunpack.c.l.b16 %v949
      %v1043 = vunpack.c.h.b16 %v949
      %v1044 = vunpack.c.l.b16 %v950
      %v1045 = vunpack.c.h.b16 %v950
      %v1046 = vunpack.c.l.b16 %v951
      %v1047 = vunpack.c.h.b16 %v951
      %v1048 = vunpack.c.l.b16 %v952
      %v1049 = vunpack.c.h.b16 %v952
      %v1050 = vunpack.c.l.b16 %v953
      %v1051 = vunpack.c.h.b16 %v953
      %v1052 = vunpack.c.l.b16 %v954
      %v1053 = vunpack.c.h.b16 %v954
      %v1054 = vunpack.c.l.b16 %v955
      %v1055 = vunpack.c.h.b16 %v955
      %v1056 = vunpack.c.l.b16 %v956
      %v1057 = vunpack.c.h.b16 %v956
      %v1058 = vunpack.c.l.b16 %v957
      %v1059 = vunpack.c.h.b16 %v957
      %v1060 = vpack.c.b16 %v998, %v996
      %v1061 = vpack.c.b16 %v999, %v997
      %v1062 = vpack.c.b16 %v1002, %v1000
      %v1063 = vpack.c.b16 %v1003, %v1001
      %v1064 = vpack.c.b16 %v1006, %v1004
      %v1065 = vpack.c.b16 %v1007, %v1005
      %v1066 = vpack.c.b16 %v1010, %v1008
      %v1067 = vpack.c.b16 %v1011, %v1009
      %v1068 = vpack.c.b16 %v1014, %v1012
      %v1069 = vpack.c.b16 %v1015, %v1013
      %v1070 = vpack.c.b16 %v1018, %v1016
      %v1071 = vpack.c.b16 %v1019, %v1017
      %v1072 = vpack.c.b16 %v1022, %v1020
      %v1073 = vpack.c.b16 %v1023, %v1021
      %v1074 = vpack.c.b16 %v1026, %v1024
      %v1075 = vpack.c.b16 %v1027, %v1025
      %v1076 = vpack.c.b16 %v1030, %v1028
      %v1077 = vpack.c.b16 %v1031, %v1029
      %v1078 = vpack.c.b16 %v1034, %v1032
      %v1079 = vpack.c.b16 %v1035, %v1033
      %v1080 = vpack.c.b16 %v1038, %v1036
      %v1081 = vpack.c.b16 %v1039, %v1037
      %v1082 = vpack.c.b16 %v1042, %v1040
      %v1083 = vpack.c.b16 %v1043, %v1041
      %v1084 = vpack.c.b16 %v1046, %v1044
      %v1085 = vpack.c.b16 %v1047, %v1045
      %v1086 = vpack.c.b16 %v1050, %v1048
      %v1087 = vpack.c.b16 %v1051, %v1049
      %v1088 = vpack.c.b16 %v1054, %v1052
      %v1089 = vpack.c.b16 %v1055, %v1053
      %v1090 = vpack.c.b16 %v1058, %v1056
      %v1091 = vpack.c.b16 %v1059, %v1057
      %1124 = vmatpush.bf16.msra.mxu0 %v1074
      %1125 = vmatpush.bf16.msra.mxu0 %v1072
      %1126 = vmatpush.bf16.msra.mxu0 %v1070
      %1127 = vmatpush.bf16.msra.mxu0 %v1068
      %1128 = vmatpush.bf16.msra.mxu0 %v1066
      %1129 = vmatpush.bf16.msra.mxu0 %v1064
      %1130 = vmatpush.bf16.msra.mxu0 %v1062
      %1131 = vmatpush.bf16.msra.mxu0 %v1060
      %1132 = vmatmul.bf16.gmra.mxu0 %v910
      %v1133 = vpop.f32.mrf.mxu0
      %v1134 = vadd.f32 %v960, %v1133
      %v1135 = vpop.f32.mrf.mxu0
      %v1136 = vadd.f32 %v960, %v1135
      %1137 = vmatmul.bf16.gmra.mxu0 %v912
      %v1138 = vpop.f32.mrf.mxu0
      %v1139 = vadd.f32 %v960, %v1138
      %v1140 = vpop.f32.mrf.mxu0
      %v1141 = vadd.f32 %v960, %v1140
      %1142 = vmatmul.bf16.gmra.mxu0 %v914
      %v1143 = vpop.f32.mrf.mxu0
      %v1144 = vadd.f32 %v960, %v1143
      %v1145 = vpop.f32.mrf.mxu0
      %v1146 = vadd.f32 %v960, %v1145
      %1147 = vmatmul.bf16.gmra.mxu0 %v916
      %v1148 = vpop.f32.mrf.mxu0
      %v1149 = vadd.f32 %v960, %v1148
      %v1150 = vpop.f32.mrf.mxu0
      %v1151 = vadd.f32 %v960, %v1150
      %1152 = vmatmul.bf16.gmra.mxu0 %v918
      %v1153 = vpop.f32.mrf.mxu0
      %v1154 = vadd.f32 %v960, %v1153
      %v1155 = vpop.f32.mrf.mxu0
      %v1156 = vadd.f32 %v960, %v1155
      %1157 = vmatmul.bf16.gmra.mxu0 %v920
      %v1158 = vpop.f32.mrf.mxu0
      %v1159 = vadd.f32 %v960, %v1158
      %v1160 = vpop.f32.mrf.mxu0
      %v1161 = vadd.f32 %v960, %v1160
      %1162 = vmatmul.bf16.gmra.mxu0 %v922
      %v1163 = vpop.f32.mrf.mxu0
      %v1164 = vadd.f32 %v960, %v1163
      %v1165 = vpop.f32.mrf.mxu0
      %v1166 = vadd.f32 %v960, %v1165
      %1167 = vmatmul.bf16.gmra.mxu0 %v924
      %v1168 = vpop.f32.mrf.mxu0
      %v1169 = vadd.f32 %v960, %v1168
      %v1170 = vpop.f32.mrf.mxu0
      %v1171 = vadd.f32 %v960, %v1170
      %1172 = vdwg.mxu0
      %1173 = vmatpush.bf16.msra.mxu0 %v1090
      %1174 = vmatpush.bf16.msra.mxu0 %v1088
      %1175 = vmatpush.bf16.msra.mxu0 %v1086
      %1176 = vmatpush.bf16.msra.mxu0 %v1084
      %1177 = vmatpush.bf16.msra.mxu0 %v1082
      %1178 = vmatpush.bf16.msra.mxu0 %v1080
      %1179 = vmatpush.bf16.msra.mxu0 %v1078
      %1180 = vmatpush.bf16.msra.mxu0 %v1076
      %1181 = vmatmul.bf16.gmra.mxu0 %v911
      %v1182 = vpop.f32.mrf.mxu0
      %v1183 = vadd.f32 %v1134, %v1182
      %v1184 = vpop.f32.mrf.mxu0
      %v1185 = vadd.f32 %v1136, %v1184
      %1186 = vmatmul.bf16.gmra.mxu0 %v913
      %v1187 = vpop.f32.mrf.mxu0
      %v1188 = vadd.f32 %v1139, %v1187
      %v1189 = vpop.f32.mrf.mxu0
      %v1190 = vadd.f32 %v1141, %v1189
      %1191 = vmatmul.bf16.gmra.mxu0 %v915
      %v1192 = vpop.f32.mrf.mxu0
      %v1193 = vadd.f32 %v1144, %v1192
      %v1194 = vpop.f32.mrf.mxu0
      %v1195 = vadd.f32 %v1146, %v1194
      %1196 = vmatmul.bf16.gmra.mxu0 %v917
      %v1197 = vpop.f32.mrf.mxu0
      %v1198 = vadd.f32 %v1149, %v1197
      %v1199 = vpop.f32.mrf.mxu0
      %v1200 = vadd.f32 %v1151, %v1199
      %1201 = vmatmul.bf16.gmra.mxu0 %v919
      %v1202 = vpop.f32.mrf.mxu0
      %v1203 = vadd.f32 %v1154, %v1202
      %v1204 = vpop.f32.mrf.mxu0
      %v1205 = vadd.f32 %v1156, %v1204
      %1206 = vmatmul.bf16.gmra.mxu0 %v921
      %v1207 = vpop.f32.mrf.mxu0
      %v1208 = vadd.f32 %v1159, %v1207
      %v1209 = vpop.f32.mrf.mxu0
      %v1210 = vadd.f32 %v1161, %v1209
      %1211 = vmatmul.bf16.gmra.mxu0 %v923
      %v1212 = vpop.f32.mrf.mxu0
      %v1213 = vadd.f32 %v1164, %v1212
      %v1214 = vpop.f32.mrf.mxu0
      %v1215 = vadd.f32 %v1166, %v1214
      %1216 = vmatmul.bf16.gmra.mxu0 %v925
      %v1217 = vpop.f32.mrf.mxu0
      %v1218 = vadd.f32 %v1169, %v1217
      %v1219 = vpop.f32.mrf.mxu0
      %v1220 = vadd.f32 %v1171, %v1219
      %1221 = vdwg.mxu0
      %1222 = vmatpush.bf16.msra.mxu0 %v1075
      %1223 = vmatpush.bf16.msra.mxu0 %v1073
      %1224 = vmatpush.bf16.msra.mxu0 %v1071
      %1225 = vmatpush.bf16.msra.mxu0 %v1069
      %1226 = vmatpush.bf16.msra.mxu0 %v1067
      %1227 = vmatpush.bf16.msra.mxu0 %v1065
      %1228 = vmatpush.bf16.msra.mxu0 %v1063
      %1229 = vmatpush.bf16.msra.mxu0 %v1061
      %1230 = vmatmul.bf16.gmra.mxu0 %v910
      %v1231 = vpop.f32.mrf.mxu0
      %v1232 = vadd.f32 %v961, %v1231
      %v1233 = vpop.f32.mrf.mxu0
      %v1234 = vadd.f32 %v961, %v1233
      %1235 = vmatmul.bf16.gmra.mxu0 %v912
      %v1236 = vpop.f32.mrf.mxu0
      %v1237 = vadd.f32 %v961, %v1236
      %v1238 = vpop.f32.mrf.mxu0
      %v1239 = vadd.f32 %v961, %v1238
      %1240 = vmatmul.bf16.gmra.mxu0 %v914
      %v1241 = vpop.f32.mrf.mxu0
      %v1242 = vadd.f32 %v961, %v1241
      %v1243 = vpop.f32.mrf.mxu0
      %v1244 = vadd.f32 %v961, %v1243
      %1245 = vmatmul.bf16.gmra.mxu0 %v916
      %v1246 = vpop.f32.mrf.mxu0
      %v1247 = vadd.f32 %v961, %v1246
      %v1248 = vpop.f32.mrf.mxu0
      %v1249 = vadd.f32 %v961, %v1248
      %1250 = vmatmul.bf16.gmra.mxu0 %v918
      %v1251 = vpop.f32.mrf.mxu0
      %v1252 = vadd.f32 %v961, %v1251
      %v1253 = vpop.f32.mrf.mxu0
      %v1254 = vadd.f32 %v961, %v1253
      %1255 = vmatmul.bf16.gmra.mxu0 %v920
      %v1256 = vpop.f32.mrf.mxu0
      %v1257 = vadd.f32 %v961, %v1256
      %v1258 = vpop.f32.mrf.mxu0
      %v1259 = vadd.f32 %v961, %v1258
      %1260 = vmatmul.bf16.gmra.mxu0 %v922
      %v1261 = vpop.f32.mrf.mxu0
      %v1262 = vadd.f32 %v961, %v1261
      %v1263 = vpop.f32.mrf.mxu0
      %v1264 = vadd.f32 %v961, %v1263
      %1265 = vmatmul.bf16.gmra.mxu0 %v924
      %v1266 = vpop.f32.mrf.mxu0
      %v1267 = vadd.f32 %v961, %v1266
      %v1268 = vpop.f32.mrf.mxu0
      %v1269 = vadd.f32 %v961, %v1268
      %1270 = vdwg.mxu0
      %1271 = vmatpush.bf16.msra.mxu0 %v1091
      %1272 = vmatpush.bf16.msra.mxu0 %v1089
      %1273 = vmatpush.bf16.msra.mxu0 %v1087
      %1274 = vmatpush.bf16.msra.mxu0 %v1085
      %1275 = vmatpush.bf16.msra.mxu0 %v1083
      %1276 = vmatpush.bf16.msra.mxu0 %v1081
      %1277 = vmatpush.bf16.msra.mxu0 %v1079
      %1278 = vmatpush.bf16.msra.mxu0 %v1077
      %1279 = vmatmul.bf16.gmra.mxu0 %v911
      %v1280 = vpop.f32.mrf.mxu0
      %v1281 = vadd.f32 %v1232, %v1280
      %v1282 = vpop.f32.mrf.mxu0
      %v1283 = vadd.f32 %v1234, %v1282
      %1284 = vmatmul.bf16.gmra.mxu0 %v913
      %v1285 = vpop.f32.mrf.mxu0
      %v1286 = vadd.f32 %v1237, %v1285
      %v1287 = vpop.f32.mrf.mxu0
      %v1288 = vadd.f32 %v1239, %v1287
      %1289 = vmatmul.bf16.gmra.mxu0 %v915
      %v1290 = vpop.f32.mrf.mxu0
      %v1291 = vadd.f32 %v1242, %v1290
      %v1292 = vpop.f32.mrf.mxu0
      %v1293 = vadd.f32 %v1244, %v1292
      %1294 = vmatmul.bf16.gmra.mxu0 %v917
      %v1295 = vpop.f32.mrf.mxu0
      %v1296 = vadd.f32 %v1247, %v1295
      %v1297 = vpop.f32.mrf.mxu0
      %v1298 = vadd.f32 %v1249, %v1297
      %1299 = vmatmul.bf16.gmra.mxu0 %v919
      %v1300 = vpop.f32.mrf.mxu0
      %v1301 = vadd.f32 %v1252, %v1300
      %v1302 = vpop.f32.mrf.mxu0
      %v1303 = vadd.f32 %v1254, %v1302
      %1304 = vmatmul.bf16.gmra.mxu0 %v921
      %v1305 = vpop.f32.mrf.mxu0
      %v1306 = vadd.f32 %v1257, %v1305
      %v1307 = vpop.f32.mrf.mxu0
      %v1308 = vadd.f32 %v1259, %v1307
      %1309 = vmatmul.bf16.gmra.mxu0 %v923
      %v1310 = vpop.f32.mrf.mxu0
      %v1311 = vadd.f32 %v1262, %v1310
      %v1312 = vpop.f32.mrf.mxu0
      %v1313 = vadd.f32 %v1264, %v1312
      %1314 = vmatmul.bf16.gmra.mxu0 %v925
      %v1315 = vpop.f32.mrf.mxu0
      %v1316 = vadd.f32 %v1267, %v1315
      %v1317 = vpop.f32.mrf.mxu0
      %v1318 = vadd.f32 %v1269, %v1317
      %1319 = vdwg.mxu0
      %v1320 = vmax.f32 %v1183, 0.0
      %v1321 = vmax.f32 %v1281, 0.0
      %v1322 = vmax.f32 %v1185, 0.0
      %v1323 = vmax.f32 %v1283, 0.0
      %v1324 = vmax.f32 %v1188, 0.0
      %v1325 = vmax.f32 %v1286, 0.0
      %v1326 = vmax.f32 %v1190, 0.0
      %v1327 = vmax.f32 %v1288, 0.0
      %v1328 = vmax.f32 %v1193, 0.0
      %v1329 = vmax.f32 %v1291, 0.0
      %v1330 = vmax.f32 %v1195, 0.0
      %v1331 = vmax.f32 %v1293, 0.0
      %v1332 = vmax.f32 %v1198, 0.0
      %v1333 = vmax.f32 %v1296, 0.0
      %v1334 = vmax.f32 %v1200, 0.0
      %v1335 = vmax.f32 %v1298, 0.0
      %v1336 = vmax.f32 %v1203, 0.0
      %v1337 = vmax.f32 %v1301, 0.0
      %v1338 = vmax.f32 %v1205, 0.0
      %v1339 = vmax.f32 %v1303, 0.0
      %v1340 = vmax.f32 %v1208, 0.0
      %v1341 = vmax.f32 %v1306, 0.0
      %v1342 = vmax.f32 %v1210, 0.0
      %v1343 = vmax.f32 %v1308, 0.0
      %v1344 = vmax.f32 %v1213, 0.0
      %v1345 = vmax.f32 %v1311, 0.0
      %v1346 = vmax.f32 %v1215, 0.0
      %v1347 = vmax.f32 %v1313, 0.0
      %v1348 = vmax.f32 %v1218, 0.0
      %v1349 = vmax.f32 %v1316, 0.0
      %v1350 = vmax.f32 %v1220, 0.0
      %v1351 = vmax.f32 %v1318, 0.0
      %1352 = vst [vmem:[#allocation4] sm:$0xff] %v1320
      %1353 = vst [vmem:[#allocation4 + $0x8] sm:$0xff] %v1321
      %1354 = vst [vmem:[#allocation4 + $0x10] sm:$0xff] %v1322
      %1355 = vst [vmem:[#allocation4 + $0x18] sm:$0xff] %v1323
      %1356 = vst [vmem:[#allocation4 + $0x20] sm:$0xff] %v1324
      %1357 = vst [vmem:[#allocation4 + $0x28] sm:$0xff] %v1325
      %1358 = vst [vmem:[#allocation4 + $0x30] sm:$0xff] %v1326
      %1359 = vst [vmem:[#allocation4 + $0x38] sm:$0xff] %v1327
      %1360 = vst [vmem:[#allocation4 + $0x40] sm:$0xff] %v1328
      %1361 = vst [vmem:[#allocation4 + $0x48] sm:$0xff] %v1329
      %1362 = vst [vmem:[#allocation4 + $0x50] sm:$0xff] %v1330
      %1363 = vst [vmem:[#allocation4 + $0x58] sm:$0xff] %v1331
      %1364 = vst [vmem:[#allocation4 + $0x60] sm:$0xff] %v1332
      %1365 = vst [vmem:[#allocation4 + $0x68] sm:$0xff] %v1333
      %1366 = vst [vmem:[#allocation4 + $0x70] sm:$0xff] %v1334
      %1367 = vst [vmem:[#allocation4 + $0x78] sm:$0xff] %v1335
      %1368 = vst [vmem:[#allocation4 + $0x80] sm:$0xff] %v1336
      %1369 = vst [vmem:[#allocation4 + $0x88] sm:$0xff] %v1337
      %1370 = vst [vmem:[#allocation4 + $0x90] sm:$0xff] %v1338
      %1371 = vst [vmem:[#allocation4 + $0x98] sm:$0xff] %v1339
      %1372 = vst [vmem:[#allocation4 + $0xa0] sm:$0xff] %v1340
      %1373 = vst [vmem:[#allocation4 + $0xa8] sm:$0xff] %v1341
      %1374 = vst [vmem:[#allocation4 + $0xb0] sm:$0xff] %v1342
      %1375 = vst [vmem:[#allocation4 + $0xb8] sm:$0xff] %v1343
      %1376 = vst [vmem:[#allocation4 + $0xc0] sm:$0xff] %v1344
      %1377 = vst [vmem:[#allocation4 + $0xc8] sm:$0xff] %v1345
      %1378 = vst [vmem:[#allocation4 + $0xd0] sm:$0xff] %v1346
      %1379 = vst [vmem:[#allocation4 + $0xd8] sm:$0xff] %v1347
      %1380 = vst [vmem:[#allocation4 + $0xe0] sm:$0xff] %v1348
      %1381 = vst [vmem:[#allocation4 + $0xe8] sm:$0xff] %v1349
      %1382 = vst [vmem:[#allocation4 + $0xf0] sm:$0xff] %v1350
      %1383 = vst [vmem:[#allocation4 + $0xf8] sm:$0xff] %v1351
      %p1384 = scmp.eq.s32.totalorder %s26, 3
      // Predicated region
      $region61: #{nice_forward.1} parent=51 // pred_check
        %p1385 = pneg %p1384
      $region62: #{nice_forward.1} parent=51 // pred_check_branch
        %1387 = sbr.rel (%p1385) target = $region64
      $region63: #{nice_forward.1} parent=51 // pred_region
        %v1388 = vld [vmem:[#allocation4] sm:$0xff]
        %v1389 = vld [vmem:[#allocation4 + $0x8] sm:$0xff]
        %v1390 = vld [vmem:[#allocation4 + $0x10] sm:$0xff]
        %v1391 = vld [vmem:[#allocation4 + $0x18] sm:$0xff]
        %v1392 = vld [vmem:[#allocation4 + $0x20] sm:$0xff]
        %v1393 = vld [vmem:[#allocation4 + $0x28] sm:$0xff]
        %v1394 = vld [vmem:[#allocation4 + $0x30] sm:$0xff]
        %v1395 = vld [vmem:[#allocation4 + $0x38] sm:$0xff]
        %v1396 = vld [vmem:[#allocation4 + $0x40] sm:$0xff]
        %v1397 = vld [vmem:[#allocation4 + $0x48] sm:$0xff]
        %v1398 = vld [vmem:[#allocation4 + $0x50] sm:$0xff]
        %v1399 = vld [vmem:[#allocation4 + $0x58] sm:$0xff]
        %v1400 = vld [vmem:[#allocation4 + $0x60] sm:$0xff]
        %v1401 = vld [vmem:[#allocation4 + $0x68] sm:$0xff]
        %v1402 = vld [vmem:[#allocation4 + $0x70] sm:$0xff]
        %v1403 = vld [vmem:[#allocation4 + $0x78] sm:$0xff]
        %v1404 = vld [vmem:[#allocation4 + $0x80] sm:$0xff]
        %v1405 = vld [vmem:[#allocation4 + $0x88] sm:$0xff]
        %v1406 = vld [vmem:[#allocation4 + $0x90] sm:$0xff]
        %v1407 = vld [vmem:[#allocation4 + $0x98] sm:$0xff]
        %v1408 = vld [vmem:[#allocation4 + $0xa0] sm:$0xff]
        %v1409 = vld [vmem:[#allocation4 + $0xa8] sm:$0xff]
        %v1410 = vld [vmem:[#allocation4 + $0xb0] sm:$0xff]
        %v1411 = vld [vmem:[#allocation4 + $0xb8] sm:$0xff]
        %v1412 = vld [vmem:[#allocation4 + $0xc0] sm:$0xff]
        %v1413 = vld [vmem:[#allocation4 + $0xc8] sm:$0xff]
        %v1414 = vld [vmem:[#allocation4 + $0xd0] sm:$0xff]
        %v1415 = vld [vmem:[#allocation4 + $0xd8] sm:$0xff]
        %v1416 = vld [vmem:[#allocation4 + $0xe0] sm:$0xff]
        %v1417 = vld [vmem:[#allocation4 + $0xe8] sm:$0xff]
        %v1418 = vld [vmem:[#allocation4 + $0xf0] sm:$0xff]
        %v1419 = vld [vmem:[#allocation4 + $0xf8] sm:$0xff]
        %v1420 = vpack.c.bf16 %v1390, %v1388
        %v1421 = vpack.c.bf16 %v1391, %v1389
        %v1422 = vpack.c.bf16 %v1394, %v1392
        %v1423 = vpack.c.bf16 %v1395, %v1393
        %v1424 = vpack.c.bf16 %v1398, %v1396
        %v1425 = vpack.c.bf16 %v1399, %v1397
        %v1426 = vpack.c.bf16 %v1402, %v1400
        %v1427 = vpack.c.bf16 %v1403, %v1401
        %v1428 = vpack.c.bf16 %v1406, %v1404
        %v1429 = vpack.c.bf16 %v1407, %v1405
        %v1430 = vpack.c.bf16 %v1410, %v1408
        %v1431 = vpack.c.bf16 %v1411, %v1409
        %v1432 = vpack.c.bf16 %v1414, %v1412
        %v1433 = vpack.c.bf16 %v1415, %v1413
        %v1434 = vpack.c.bf16 %v1418, %v1416
        %v1435 = vpack.c.bf16 %v1419, %v1417
        %v1436 = vld [vmem:[%s458] sm:$0xf]
        %v1437 = vld [vmem:[%s458 + $0x4] sm:$0xf]
        %v1438 = vld [vmem:[%s458 + $0x8] sm:$0xf]
        %v1439 = vld [vmem:[%s458 + $0xc] sm:$0xf]
        %v1440 = vld [vmem:[%s458 + $0x10] sm:$0xf]
        %v1441 = vld [vmem:[%s458 + $0x14] sm:$0xf]
        %v1442 = vld [vmem:[%s458 + $0x18] sm:$0xf]
        %v1443 = vld [vmem:[%s458 + $0x1c] sm:$0xf]
        %v1444 = vld [vmem:[%s458 + $0x20] sm:$0xf]
        %v1445 = vld [vmem:[%s458 + $0x24] sm:$0xf]
        %v1446 = vld [vmem:[%s458 + $0x28] sm:$0xf]
        %v1447 = vld [vmem:[%s458 + $0x2c] sm:$0xf]
        %v1448 = vld [vmem:[%s458 + $0x30] sm:$0xf]
        %v1449 = vld [vmem:[%s458 + $0x34] sm:$0xf]
        %v1450 = vld [vmem:[%s458 + $0x38] sm:$0xf]
        %v1451 = vld [vmem:[%s458 + $0x3c] sm:$0xf]
        %v1452 = vld [vmem:[%s458 + $0x40] sm:$0xf]
        %v1453 = vld [vmem:[%s458 + $0x44] sm:$0xf]
        %v1454 = vld [vmem:[%s458 + $0x48] sm:$0xf]
        %v1455 = vld [vmem:[%s458 + $0x4c] sm:$0xf]
        %v1456 = vld [vmem:[%s458 + $0x50] sm:$0xf]
        %v1457 = vld [vmem:[%s458 + $0x54] sm:$0xf]
        %v1458 = vld [vmem:[%s458 + $0x58] sm:$0xf]
        %v1459 = vld [vmem:[%s458 + $0x5c] sm:$0xf]
        %v1460 = vld [vmem:[%s458 + $0x60] sm:$0xf]
        %v1461 = vld [vmem:[%s458 + $0x64] sm:$0xf]
        %v1462 = vld [vmem:[%s458 + $0x68] sm:$0xf]
        %v1463 = vld [vmem:[%s458 + $0x6c] sm:$0xf]
        %v1464 = vld [vmem:[%s458 + $0x70] sm:$0xf]
        %v1465 = vld [vmem:[%s458 + $0x74] sm:$0xf]
        %v1466 = vld [vmem:[%s458 + $0x78] sm:$0xf]
        %v1467 = vld [vmem:[%s458 + $0x7c] sm:$0xf]
        %v1468 = vld [vmem:[%s461] sm:$0x1]
        %v1470 = vperm.slane %v1468, 0
        %v1504 = vunpack.c.l.b16 %v1436
        %v1505 = vunpack.c.l.b16 %v1437
        %v1506 = vunpack.c.l.b16 %v1438
        %v1507 = vunpack.c.l.b16 %v1439
        %v1508 = vunpack.c.l.b16 %v1440
        %v1509 = vunpack.c.l.b16 %v1441
        %v1510 = vunpack.c.l.b16 %v1442
        %v1511 = vunpack.c.l.b16 %v1443
        %v1512 = vunpack.c.l.b16 %v1444
        %v1513 = vunpack.c.l.b16 %v1445
        %v1514 = vunpack.c.l.b16 %v1446
        %v1515 = vunpack.c.l.b16 %v1447
        %v1516 = vunpack.c.l.b16 %v1448
        %v1517 = vunpack.c.l.b16 %v1449
        %v1518 = vunpack.c.l.b16 %v1450
        %v1519 = vunpack.c.l.b16 %v1451
        %v1520 = vunpack.c.l.b16 %v1452
        %v1521 = vunpack.c.l.b16 %v1453
        %v1522 = vunpack.c.l.b16 %v1454
        %v1523 = vunpack.c.l.b16 %v1455
        %v1524 = vunpack.c.l.b16 %v1456
        %v1525 = vunpack.c.l.b16 %v1457
        %v1526 = vunpack.c.l.b16 %v1458
        %v1527 = vunpack.c.l.b16 %v1459
        %v1528 = vunpack.c.l.b16 %v1460
        %v1529 = vunpack.c.l.b16 %v1461
        %v1530 = vunpack.c.l.b16 %v1462
        %v1531 = vunpack.c.l.b16 %v1463
        %v1532 = vunpack.c.l.b16 %v1464
        %v1533 = vunpack.c.l.b16 %v1465
        %v1534 = vunpack.c.l.b16 %v1466
        %v1535 = vunpack.c.l.b16 %v1467
        %v1536 = vpack.c.b16 %v1505, %v1504
        %v1537 = vpack.c.b16 %v1507, %v1506
        %v1538 = vpack.c.b16 %v1509, %v1508
        %v1539 = vpack.c.b16 %v1511, %v1510
        %v1540 = vpack.c.b16 %v1513, %v1512
        %v1541 = vpack.c.b16 %v1515, %v1514
        %v1542 = vpack.c.b16 %v1517, %v1516
        %v1543 = vpack.c.b16 %v1519, %v1518
        %v1544 = vpack.c.b16 %v1521, %v1520
        %v1545 = vpack.c.b16 %v1523, %v1522
        %v1546 = vpack.c.b16 %v1525, %v1524
        %v1547 = vpack.c.b16 %v1527, %v1526
        %v1548 = vpack.c.b16 %v1529, %v1528
        %v1549 = vpack.c.b16 %v1531, %v1530
        %v1550 = vpack.c.b16 %v1533, %v1532
        %v1551 = vpack.c.b16 %v1535, %v1534
        %1568 = vmatpush.bf16.msra.mxu0 %v1543
        %1569 = vmatpush.bf16.msra.mxu0 %v1542
        %1570 = vmatpush.bf16.msra.mxu0 %v1541
        %1571 = vmatpush.bf16.msra.mxu0 %v1540
        %1572 = vmatpush.bf16.msra.mxu0 %v1539
        %1573 = vmatpush.bf16.msra.mxu0 %v1538
        %1574 = vmatpush.bf16.msra.mxu0 %v1537
        %1575 = vmatpush.bf16.msra.mxu0 %v1536
        %1576 = vmatmul.bf16.gmra.mxu0 %v1420
        %v1577 = vpop.f32.mrf.mxu0
        %v1578 = vadd.f32 %v1470, %v1577
        %v1579 = vpop.f32.mrf.mxu0
        %v1580 = vadd.f32 %v1470, %v1579
        %1581 = vmatmul.bf16.gmra.mxu0 %v1422
        %v1582 = vpop.f32.mrf.mxu0
        %v1583 = vadd.f32 %v1470, %v1582
        %v1584 = vpop.f32.mrf.mxu0
        %v1585 = vadd.f32 %v1470, %v1584
        %1586 = vmatmul.bf16.gmra.mxu0 %v1424
        %v1587 = vpop.f32.mrf.mxu0
        %v1588 = vadd.f32 %v1470, %v1587
        %v1589 = vpop.f32.mrf.mxu0
        %v1590 = vadd.f32 %v1470, %v1589
        %1591 = vmatmul.bf16.gmra.mxu0 %v1426
        %v1592 = vpop.f32.mrf.mxu0
        %v1593 = vadd.f32 %v1470, %v1592
        %v1594 = vpop.f32.mrf.mxu0
        %v1595 = vadd.f32 %v1470, %v1594
        %1596 = vmatmul.bf16.gmra.mxu0 %v1428
        %v1597 = vpop.f32.mrf.mxu0
        %v1598 = vadd.f32 %v1470, %v1597
        %v1599 = vpop.f32.mrf.mxu0
        %v1600 = vadd.f32 %v1470, %v1599
        %1601 = vmatmul.bf16.gmra.mxu0 %v1430
        %v1602 = vpop.f32.mrf.mxu0
        %v1603 = vadd.f32 %v1470, %v1602
        %v1604 = vpop.f32.mrf.mxu0
        %v1605 = vadd.f32 %v1470, %v1604
        %1606 = vmatmul.bf16.gmra.mxu0 %v1432
        %v1607 = vpop.f32.mrf.mxu0
        %v1608 = vadd.f32 %v1470, %v1607
        %v1609 = vpop.f32.mrf.mxu0
        %v1610 = vadd.f32 %v1470, %v1609
        %1611 = vmatmul.bf16.gmra.mxu0 %v1434
        %v1612 = vpop.f32.mrf.mxu0
        %v1613 = vadd.f32 %v1470, %v1612
        %v1614 = vpop.f32.mrf.mxu0
        %v1615 = vadd.f32 %v1470, %v1614
        %1616 = vdwg.mxu0
        %1617 = vmatpush.bf16.msra.mxu0 %v1551
        %1618 = vmatpush.bf16.msra.mxu0 %v1550
        %1619 = vmatpush.bf16.msra.mxu0 %v1549
        %1620 = vmatpush.bf16.msra.mxu0 %v1548
        %1621 = vmatpush.bf16.msra.mxu0 %v1547
        %1622 = vmatpush.bf16.msra.mxu0 %v1546
        %1623 = vmatpush.bf16.msra.mxu0 %v1545
        %1624 = vmatpush.bf16.msra.mxu0 %v1544
        %1625 = vmatmul.bf16.gmra.mxu0 %v1421
        %v1626 = vpop.f32.mrf.mxu0
        %v1627 = vadd.f32 %v1578, %v1626
        %v1628 = vpop.f32.mrf.mxu0
        %v1629 = vadd.f32 %v1580, %v1628
        %1630 = vmatmul.bf16.gmra.mxu0 %v1423
        %v1631 = vpop.f32.mrf.mxu0
        %v1632 = vadd.f32 %v1583, %v1631
        %v1633 = vpop.f32.mrf.mxu0
        %v1634 = vadd.f32 %v1585, %v1633
        %1635 = vmatmul.bf16.gmra.mxu0 %v1425
        %v1636 = vpop.f32.mrf.mxu0
        %v1637 = vadd.f32 %v1588, %v1636
        %v1638 = vpop.f32.mrf.mxu0
        %v1639 = vadd.f32 %v1590, %v1638
        %1640 = vmatmul.bf16.gmra.mxu0 %v1427
        %v1641 = vpop.f32.mrf.mxu0
        %v1642 = vadd.f32 %v1593, %v1641
        %v1643 = vpop.f32.mrf.mxu0
        %v1644 = vadd.f32 %v1595, %v1643
        %1645 = vmatmul.bf16.gmra.mxu0 %v1429
        %v1646 = vpop.f32.mrf.mxu0
        %v1647 = vadd.f32 %v1598, %v1646
        %v1648 = vpop.f32.mrf.mxu0
        %v1649 = vadd.f32 %v1600, %v1648
        %1650 = vmatmul.bf16.gmra.mxu0 %v1431
        %v1651 = vpop.f32.mrf.mxu0
        %v1652 = vadd.f32 %v1603, %v1651
        %v1653 = vpop.f32.mrf.mxu0
        %v1654 = vadd.f32 %v1605, %v1653
        %1655 = vmatmul.bf16.gmra.mxu0 %v1433
        %v1656 = vpop.f32.mrf.mxu0
        %v1657 = vadd.f32 %v1608, %v1656
        %v1658 = vpop.f32.mrf.mxu0
        %v1659 = vadd.f32 %v1610, %v1658
        %1660 = vmatmul.bf16.gmra.mxu0 %v1435
        %v1661 = vpop.f32.mrf.mxu0
        %v1662 = vadd.f32 %v1613, %v1661
        %v1663 = vpop.f32.mrf.mxu0
        %v1664 = vadd.f32 %v1615, %v1663
        %1665 = vdwg.mxu0
        %v1666 = vld [vmem:[#allocation2] sm:$0xff]
        %v1667 = vld [vmem:[#allocation2 + $0x8] sm:$0xff]
        %v1668 = vld [vmem:[#allocation2 + $0x10] sm:$0xff]
        %v1669 = vld [vmem:[#allocation2 + $0x18] sm:$0xff]
        %v1670 = vld [vmem:[#allocation2 + $0x20] sm:$0xff]
        %v1671 = vld [vmem:[#allocation2 + $0x28] sm:$0xff]
        %v1672 = vld [vmem:[#allocation2 + $0x30] sm:$0xff]
        %v1673 = vld [vmem:[#allocation2 + $0x38] sm:$0xff]
        %v1674 = vld [vmem:[#allocation2 + $0x40] sm:$0xff]
        %v1675 = vld [vmem:[#allocation2 + $0x48] sm:$0xff]
        %v1676 = vld [vmem:[#allocation2 + $0x50] sm:$0xff]
        %v1677 = vld [vmem:[#allocation2 + $0x58] sm:$0xff]
        %v1678 = vld [vmem:[#allocation2 + $0x60] sm:$0xff]
        %v1679 = vld [vmem:[#allocation2 + $0x68] sm:$0xff]
        %v1680 = vld [vmem:[#allocation2 + $0x70] sm:$0xff]
        %v1681 = vld [vmem:[#allocation2 + $0x78] sm:$0xff]
        %v1682 = vld [vmem:[#allocation3] sm:$0xff]
        %v1683 = vld [vmem:[#allocation3 + $0x8] sm:$0xff]
        %v1684 = vld [vmem:[#allocation3 + $0x10] sm:$0xff]
        %v1685 = vld [vmem:[#allocation3 + $0x18] sm:$0xff]
        %v1686 = vld [vmem:[#allocation3 + $0x20] sm:$0xff]
        %v1687 = vld [vmem:[#allocation3 + $0x28] sm:$0xff]
        %v1688 = vld [vmem:[#allocation3 + $0x30] sm:$0xff]
        %v1689 = vld [vmem:[#allocation3 + $0x38] sm:$0xff]
        %v1690 = vld [vmem:[#allocation3 + $0x40] sm:$0xff]
        %v1691 = vld [vmem:[#allocation3 + $0x48] sm:$0xff]
        %v1692 = vld [vmem:[#allocation3 + $0x50] sm:$0xff]
        %v1693 = vld [vmem:[#allocation3 + $0x58] sm:$0xff]
        %v1694 = vld [vmem:[#allocation3 + $0x60] sm:$0xff]
        %v1695 = vld [vmem:[#allocation3 + $0x68] sm:$0xff]
        %v1696 = vld [vmem:[#allocation3 + $0x70] sm:$0xff]
        %v1697 = vld [vmem:[#allocation3 + $0x78] sm:$0xff]
        %s1698 = scalar_select %p481, 1, 0
        %v1699 = vstv %s1698
        %vm1700 = vcmp.eq.s32.totalorder %v1699, 1
        %v1701 = vsel %vm1700, %v1666, %v1682
        %v1702 = vsel %vm1700, %v1667, %v1683
        %v1703 = vsel %vm1700, %v1668, %v1684
        %v1704 = vsel %vm1700, %v1669, %v1685
        %v1705 = vsel %vm1700, %v1670, %v1686
        %v1706 = vsel %vm1700, %v1671, %v1687
        %v1707 = vsel %vm1700, %v1672, %v1688
        %v1708 = vsel %vm1700, %v1673, %v1689
        %v1709 = vsel %vm1700, %v1674, %v1690
        %v1710 = vsel %vm1700, %v1675, %v1691
        %v1711 = vsel %vm1700, %v1676, %v1692
        %v1712 = vsel %vm1700, %v1677, %v1693
        %v1713 = vsel %vm1700, %v1678, %v1694
        %v1714 = vsel %vm1700, %v1679, %v1695
        %v1715 = vsel %vm1700, %v1680, %v1696
        %v1716 = vsel %vm1700, %v1681, %v1697
        %v1717 = vsel %vm1700, %v1682, %v1666
        %v1718 = vsel %vm1700, %v1683, %v1667
        %v1719 = vsel %vm1700, %v1684, %v1668
        %v1720 = vsel %vm1700, %v1685, %v1669
        %v1721 = vsel %vm1700, %v1686, %v1670
        %v1722 = vsel %vm1700, %v1687, %v1671
        %v1723 = vsel %vm1700, %v1688, %v1672
        %v1724 = vsel %vm1700, %v1689, %v1673
        %v1725 = vsel %vm1700, %v1690, %v1674
        %v1726 = vsel %vm1700, %v1691, %v1675
        %v1727 = vsel %vm1700, %v1692, %v1676
        %v1728 = vsel %vm1700, %v1693, %v1677
        %v1729 = vsel %vm1700, %v1694, %v1678
        %v1730 = vsel %vm1700, %v1695, %v1679
        %v1731 = vsel %vm1700, %v1696, %v1680
        %v1732 = vsel %vm1700, %v1697, %v1681
        %1733 = vst [vmem:[#allocation2] sm:$0xff] %v1701
        %1734 = vst [vmem:[#allocation2 + $0x8] sm:$0xff] %v1702
        %1735 = vst [vmem:[#allocation2 + $0x10] sm:$0xff] %v1703
        %1736 = vst [vmem:[#allocation2 + $0x18] sm:$0xff] %v1704
        %1737 = vst [vmem:[#allocation2 + $0x20] sm:$0xff] %v1705
        %1738 = vst [vmem:[#allocation2 + $0x28] sm:$0xff] %v1706
        %1739 = vst [vmem:[#allocation2 + $0x30] sm:$0xff] %v1707
        %1740 = vst [vmem:[#allocation2 + $0x38] sm:$0xff] %v1708
        %1741 = vst [vmem:[#allocation2 + $0x40] sm:$0xff] %v1709
        %1742 = vst [vmem:[#allocation2 + $0x48] sm:$0xff] %v1710
        %1743 = vst [vmem:[#allocation2 + $0x50] sm:$0xff] %v1711
        %1744 = vst [vmem:[#allocation2 + $0x58] sm:$0xff] %v1712
        %1745 = vst [vmem:[#allocation2 + $0x60] sm:$0xff] %v1713
        %1746 = vst [vmem:[#allocation2 + $0x68] sm:$0xff] %v1714
        %1747 = vst [vmem:[#allocation2 + $0x70] sm:$0xff] %v1715
        %1748 = vst [vmem:[#allocation2 + $0x78] sm:$0xff] %v1716
        %v1749 = vadd.f32 %v1717, %v1627
        %v1750 = vadd.f32 %v1718, %v1629
        %v1751 = vadd.f32 %v1719, %v1632
        %v1752 = vadd.f32 %v1720, %v1634
        %v1753 = vadd.f32 %v1721, %v1637
        %v1754 = vadd.f32 %v1722, %v1639
        %v1755 = vadd.f32 %v1723, %v1642
        %v1756 = vadd.f32 %v1724, %v1644
        %v1757 = vadd.f32 %v1725, %v1647
        %v1758 = vadd.f32 %v1726, %v1649
        %v1759 = vadd.f32 %v1727, %v1652
        %v1760 = vadd.f32 %v1728, %v1654
        %v1761 = vadd.f32 %v1729, %v1657
        %v1762 = vadd.f32 %v1730, %v1659
        %v1763 = vadd.f32 %v1731, %v1662
        %v1764 = vadd.f32 %v1732, %v1664
        %1765 = vst [vmem:[#allocation3] sm:$0xff] %v1749
        %1766 = vst [vmem:[#allocation3 + $0x8] sm:$0xff] %v1750
        %1767 = vst [vmem:[#allocation3 + $0x10] sm:$0xff] %v1751
        %1768 = vst [vmem:[#allocation3 + $0x18] sm:$0xff] %v1752
        %1769 = vst [vmem:[#allocation3 + $0x20] sm:$0xff] %v1753
        %1770 = vst [vmem:[#allocation3 + $0x28] sm:$0xff] %v1754
        %1771 = vst [vmem:[#allocation3 + $0x30] sm:$0xff] %v1755
        %1772 = vst [vmem:[#allocation3 + $0x38] sm:$0xff] %v1756
        %1773 = vst [vmem:[#allocation3 + $0x40] sm:$0xff] %v1757
        %1774 = vst [vmem:[#allocation3 + $0x48] sm:$0xff] %v1758
        %1775 = vst [vmem:[#allocation3 + $0x50] sm:$0xff] %v1759
        %1776 = vst [vmem:[#allocation3 + $0x58] sm:$0xff] %v1760
        %1777 = vst [vmem:[#allocation3 + $0x60] sm:$0xff] %v1761
        %1778 = vst [vmem:[#allocation3 + $0x68] sm:$0xff] %v1762
        %1779 = vst [vmem:[#allocation3 + $0x70] sm:$0xff] %v1763
        %1780 = vst [vmem:[#allocation3 + $0x78] sm:$0xff] %v1764
      $region64: #{nice_forward.1} parent=51 // pred_fallthru
        _
      %p1781 = scmp.eq.s32.totalorder %s25, 3
      %p1782 = pnand %p1781, %p1384
      %p1783 = pneg %p1782
      // Predicated region
      $region65: #{nice_forward.1} parent=51 // pred_check
        _
      $region66: #{nice_forward.1} parent=51 // pred_check_branch
        %1785 = sbr.rel (%p1782) target = $region68
      $region67: #{nice_forward.1} parent=51 // pred_region
        %v1786 = vld [vmem:[%s1] sm:$0x1]
        %v1787 = vmul.f32 %v1786, 1.442695
        %v1788 = vpow.pop %v1787
        %v1789 = vld [vmem:[#allocation2] sm:$0xff]
        %v1790 = vld [vmem:[#allocation2 + $0x8] sm:$0xff]
        %v1791 = vld [vmem:[#allocation2 + $0x10] sm:$0xff]
        %v1792 = vld [vmem:[#allocation2 + $0x18] sm:$0xff]
        %v1793 = vld [vmem:[#allocation2 + $0x20] sm:$0xff]
        %v1794 = vld [vmem:[#allocation2 + $0x28] sm:$0xff]
        %v1795 = vld [vmem:[#allocation2 + $0x30] sm:$0xff]
        %v1796 = vld [vmem:[#allocation2 + $0x38] sm:$0xff]
        %v1797 = vld [vmem:[#allocation2 + $0x40] sm:$0xff]
        %v1798 = vld [vmem:[#allocation2 + $0x48] sm:$0xff]
        %v1799 = vld [vmem:[#allocation2 + $0x50] sm:$0xff]
        %v1800 = vld [vmem:[#allocation2 + $0x58] sm:$0xff]
        %v1801 = vld [vmem:[#allocation2 + $0x60] sm:$0xff]
        %v1802 = vld [vmem:[#allocation2 + $0x68] sm:$0xff]
        %v1803 = vld [vmem:[#allocation2 + $0x70] sm:$0xff]
        %v1804 = vld [vmem:[#allocation2 + $0x78] sm:$0xff]
        %v1806 = vperm.slane %v1788, 0
        %v1808 = vmul.f32 %v1806, %v1789
        %v1809 = vmul.f32 %v1806, %v1790
        %v1810 = vmul.f32 %v1806, %v1791
        %v1811 = vmul.f32 %v1806, %v1792
        %v1812 = vmul.f32 %v1806, %v1793
        %v1813 = vmul.f32 %v1806, %v1794
        %v1814 = vmul.f32 %v1806, %v1795
        %v1815 = vmul.f32 %v1806, %v1796
        %v1816 = vmul.f32 %v1806, %v1797
        %v1817 = vmul.f32 %v1806, %v1798
        %v1818 = vmul.f32 %v1806, %v1799
        %v1819 = vmul.f32 %v1806, %v1800
        %v1820 = vmul.f32 %v1806, %v1801
        %v1821 = vmul.f32 %v1806, %v1802
        %v1822 = vmul.f32 %v1806, %v1803
        %v1823 = vmul.f32 %v1806, %v1804
        %1824 = vst [vmem:[%s467] sm:$0xff] %v1808
        %1825 = vst [vmem:[%s467 + $0x10] sm:$0xff] %v1809
        %1826 = vst [vmem:[%s467 + $0x20] sm:$0xff] %v1810
        %1827 = vst [vmem:[%s467 + $0x30] sm:$0xff] %v1811
        %1828 = vst [vmem:[%s467 + $0x40] sm:$0xff] %v1812
        %1829 = vst [vmem:[%s467 + $0x50] sm:$0xff] %v1813
        %1830 = vst [vmem:[%s467 + $0x60] sm:$0xff] %v1814
        %1831 = vst [vmem:[%s467 + $0x70] sm:$0xff] %v1815
        %1832 = vst [vmem:[%s467 + $0x80] sm:$0xff] %v1816
        %1833 = vst [vmem:[%s467 + $0x90] sm:$0xff] %v1817
        %1834 = vst [vmem:[%s467 + $0xa0] sm:$0xff] %v1818
        %1835 = vst [vmem:[%s467 + $0xb0] sm:$0xff] %v1819
        %1836 = vst [vmem:[%s467 + $0xc0] sm:$0xff] %v1820
        %1837 = vst [vmem:[%s467 + $0xd0] sm:$0xff] %v1821
        %1838 = vst [vmem:[%s467 + $0xe0] sm:$0xff] %v1822
        %1839 = vst [vmem:[%s467 + $0xf0] sm:$0xff] %v1823
        %v1840 = vld [vmem:[%s1 + $0x1] sm:$0x1]
        %v1841 = vmul.f32 %v1840, 1.442695
        %v1842 = vpow.pop %v1841
        %v1843 = vld [vmem:[#allocation3] sm:$0xff]
        %v1844 = vld [vmem:[#allocation3 + $0x8] sm:$0xff]
        %v1845 = vld [vmem:[#allocation3 + $0x10] sm:$0xff]
        %v1846 = vld [vmem:[#allocation3 + $0x18] sm:$0xff]
        %v1847 = vld [vmem:[#allocation3 + $0x20] sm:$0xff]
        %v1848 = vld [vmem:[#allocation3 + $0x28] sm:$0xff]
        %v1849 = vld [vmem:[#allocation3 + $0x30] sm:$0xff]
        %v1850 = vld [vmem:[#allocation3 + $0x38] sm:$0xff]
        %v1851 = vld [vmem:[#allocation3 + $0x40] sm:$0xff]
        %v1852 = vld [vmem:[#allocation3 + $0x48] sm:$0xff]
        %v1853 = vld [vmem:[#allocation3 + $0x50] sm:$0xff]
        %v1854 = vld [vmem:[#allocation3 + $0x58] sm:$0xff]
        %v1855 = vld [vmem:[#allocation3 + $0x60] sm:$0xff]
        %v1856 = vld [vmem:[#allocation3 + $0x68] sm:$0xff]
        %v1857 = vld [vmem:[#allocation3 + $0x70] sm:$0xff]
        %v1858 = vld [vmem:[#allocation3 + $0x78] sm:$0xff]
        %v1860 = vperm.slane %v1842, 0
        %v1862 = vmul.f32 %v1860, %v1843
        %v1863 = vmul.f32 %v1860, %v1844
        %v1864 = vmul.f32 %v1860, %v1845
        %v1865 = vmul.f32 %v1860, %v1846
        %v1866 = vmul.f32 %v1860, %v1847
        %v1867 = vmul.f32 %v1860, %v1848
        %v1868 = vmul.f32 %v1860, %v1849
        %v1869 = vmul.f32 %v1860, %v1850
        %v1870 = vmul.f32 %v1860, %v1851
        %v1871 = vmul.f32 %v1860, %v1852
        %v1872 = vmul.f32 %v1860, %v1853
        %v1873 = vmul.f32 %v1860, %v1854
        %v1874 = vmul.f32 %v1860, %v1855
        %v1875 = vmul.f32 %v1860, %v1856
        %v1876 = vmul.f32 %v1860, %v1857
        %v1877 = vmul.f32 %v1860, %v1858
        %1878 = vst [vmem:[%s467 + $0x8] sm:$0xff] %v1862
        %1879 = vst [vmem:[%s467 + $0x18] sm:$0xff] %v1863
        %1880 = vst [vmem:[%s467 + $0x28] sm:$0xff] %v1864
        %1881 = vst [vmem:[%s467 + $0x38] sm:$0xff] %v1865
        %1882 = vst [vmem:[%s467 + $0x48] sm:$0xff] %v1866
        %1883 = vst [vmem:[%s467 + $0x58] sm:$0xff] %v1867
        %1884 = vst [vmem:[%s467 + $0x68] sm:$0xff] %v1868
        %1885 = vst [vmem:[%s467 + $0x78] sm:$0xff] %v1869
        %1886 = vst [vmem:[%s467 + $0x88] sm:$0xff] %v1870
        %1887 = vst [vmem:[%s467 + $0x98] sm:$0xff] %v1871
        %1888 = vst [vmem:[%s467 + $0xa8] sm:$0xff] %v1872
        %1889 = vst [vmem:[%s467 + $0xb8] sm:$0xff] %v1873
        %1890 = vst [vmem:[%s467 + $0xc8] sm:$0xff] %v1874
        %1891 = vst [vmem:[%s467 + $0xd8] sm:$0xff] %v1875
        %1892 = vst [vmem:[%s467 + $0xe8] sm:$0xff] %v1876
        %1893 = vst [vmem:[%s467 + $0xf8] sm:$0xff] %v1877
      $region68: #{nice_forward.1} parent=51 // pred_fallthru
        _
      %s1894 = smul.u32 16, %s24
      %p1895 = scmp.lt.s32.totalorder %s1894, 31
      %s1896 = scalar_select %p1895, %s1894, 31
      %s1897 = smul.addr %s1896, 2
      %s1898 = smul.addr %s1897, 8
      %s1899 = scalar_lea.vmem %s8, %s1898
      // Predicated region
      $region69: #{nice_forward.1} parent=51 // pred_check
        %p1900 = pneg %p263
      $region70: #{nice_forward.1} parent=51 // pred_check_branch
        %1902 = sbr.rel (%p1900) target = $region72
      $region71: #{nice_forward.1} parent=51 // pred_region
        %s1903 = smul.u32 16, %s24
      $region72: #{nice_forward.1} parent=51 // pred_fallthru
        _
    $region52: #{nice_forward.1} parent=5 // pred_fallthru
      _
    %p1904 = scmp.le.s32.totalorder 2, %s14
    // Predicated region
    $region73: #{nice_forward.1} parent=5 // pred_check
      %p1905 = pneg %p1904
    $region74: #{nice_forward.1} parent=5 // pred_check_branch
      %1907 = sbr.rel (%p1905) target = $region76
    $region75: #{nice_forward.1} parent=5 // pred_region
      %s1908 = ssub.s32 %s14, 2
      // Predicated region
      $region77: #{nice_forward.1} parent=75 // pred_check
        %p1909 = pneg %p269
      $region78: #{nice_forward.1} parent=75 // pred_check_branch
        %1911 = sbr.rel (%p1909) target = $region80
      $region79: #{nice_forward.1} parent=75 // pred_region
        %s1912 = smul.u32 16, %s27
        %p1913 = scmp.lt.s32.totalorder %s1912, 31
        %s1914 = scalar_select %p1913, %s1912, 31
        %s1915 = smul.addr %s1914, 2
        %s1916 = smul.addr %s1915, 8
        %s1917 = scalar_lea.vmem %s8, %s1916
      $region80: #{nice_forward.1} parent=75 // pred_fallthru
        _
    $region76: #{nice_forward.1} parent=5 // pred_fallthru
      _
  $region6: #{nice_forward.1} parent=0 // loop_footer
    %s18 = sadd.s32 1, %s14
  $region7: #{nice_forward.1} parent=0 // loop_footer_branch
    %13 = sbr.rel target = $region3
  $region8: #{nice_forward.1} parent=0 // loop_exit
    _

</llo_original>
